<compile_context>
chip_gen: v5e
topology: v5e:2x2
jax: 0.10.0
libtpu: 0.0.40
codegen_flags: <defaults>
</compile_context>

<pallas_src>
import math
from functools import partial

import jax
import jax.numpy as jnp
from jax.experimental import pallas as pl
from jax.experimental.pallas import tpu as pltpu


def _layer_norm(x, w, b, eps=1e-5):
    mu = jnp.mean(x, axis=-1, keepdims=True)
    var = jnp.mean((x - mu) ** 2, axis=-1, keepdims=True)
    return (x - mu) * jax.lax.rsqrt(var + eps) * w + b


def fused_layers_kernel(
        x0_hbm,                                   # (B*T, D) f32, memory_space=ANY
        ln1w, ln1b, wqkv, bqkv, wo, bo, ln2w, ln2b, w1, b1, w2, b2,   # per-layer
        lnfw, lnfb,                               # final LayerNorm
        hid_ref,                                  # out: (BcT, D) f32 (LN'd hidden)
        res_ref, dma_sem,                         # scratch: residual stream + DMA sem
        *, n_heads, seq_len):
    bc = pl.program_id(0)
    l = pl.program_id(1)
    n_layers = pl.num_programs(1)

    BcT, D = res_ref.shape
    H = n_heads
    dh = D // H

    # Load this batch chunk's embedded input into the resident residual scratch once
    # (x0 lives in HBM; it is never pinned in VMEM across the layer loop).
    @pl.when(l == 0)
    def _():
        row0 = pl.multiple_of(bc * BcT, BcT)
        cp = pltpu.make_async_copy(x0_hbm.at[pl.ds(row0, BcT)], res_ref, dma_sem)
        cp.start()
        cp.wait()

    x = res_ref[...]                              # (BcT, D) f32 residual stream

    # ---- causal multi-head self-attention (pre-LN) ----
    h = _layer_norm(x, ln1w[0], ln1b[0]).astype(jnp.bfloat16)
    qkv = jnp.dot(h, wqkv[0], preferred_element_type=jnp.float32) + bqkv[0]
    # 1/sqrt(dh) already folded into the Q columns of wqkv/bqkv host-side.
    q = qkv[:, :D].astype(jnp.bfloat16)           # lane slices at D-aligned offsets
    k = qkv[:, D:2 * D].astype(jnp.bfloat16)
    v = qkv[:, 2 * D:].astype(jnp.bfloat16)

    def to_heads(a):                              # (BcT, D) -> (H, BcT, dh), one op
        return jnp.transpose(a.reshape(BcT, H, dh), (1, 0, 2))

    qh, kh, vh = to_heads(q), to_heads(k), to_heads(v)

    # head-batched scores, f32 accumulation on the MXU
    s = jnp.einsum('hqd,hkd->hqk', qh, kh, preferred_element_type=jnp.float32)

    # block-diagonal causal mask built in-kernel (no HBM mask input)
    rows = jax.lax.broadcasted_iota(jnp.int32, (BcT, BcT), 0)
    cols = jax.lax.broadcasted_iota(jnp.int32, (BcT, BcT), 1)
    if BcT == seq_len:                            # one batch element per chunk
        allowed = rows >= cols
    else:                                         # several batch elems folded in rows
        allowed = (rows >= cols) & ((rows // seq_len) == (cols // seq_len))
    s = jnp.where(allowed[None, :, :], s, -1e30)

    s = s - jnp.max(s, axis=-1, keepdims=True)
    p = jnp.exp(s)
    p = p * pl.reciprocal(jnp.sum(p, axis=-1, keepdims=True), approx=True)

    o = jnp.einsum('hqk,hkd->hqd', p.astype(jnp.bfloat16), vh,
                   preferred_element_type=jnp.float32)           # (H, BcT, dh)

    # head-batched output projection (wo pre-reshaped to (H, dh, D)); no concat.
    att_h = jnp.einsum('hqd,hdn->hqn', o.astype(jnp.bfloat16), wo[0],
                       preferred_element_type=jnp.float32)       # (H, BcT, D)
    att = jnp.sum(att_h, axis=0) + bo[0]
    x = x + att

    # ---- MLP (pre-LN) ----
    h2 = _layer_norm(x, ln2w[0], ln2b[0]).astype(jnp.bfloat16)
    m = jnp.dot(h2, w1[0], preferred_element_type=jnp.float32) + b1[0]
    m = jax.nn.gelu(m, approximate=True)
    m = jnp.dot(m.astype(jnp.bfloat16), w2[0],
                preferred_element_type=jnp.float32) + b2[0]
    x = x + m
    res_ref[...] = x

    # ---- final LayerNorm on the last layer step (logits head is a separate call) ----
    @pl.when(l == n_layers - 1)
    def _():
        hid_ref[...] = _layer_norm(x, lnfw[...], lnfb[...]).astype(hid_ref.dtype)


def lm_head_kernel(h_ref, wt_ref, b_ref, out_ref):
    # logits tile = hidden @ w_tied[vtile].T + b[vtile]; contraction over D so the
    # (V, D) tied embedding is used as-is (no host-side transpose); lane-dense output.
    h = h_ref[...].astype(jnp.bfloat16)
    logits = jax.lax.dot_general(
        h, wt_ref[...],
        dimension_numbers=(((1,), (1,)), ((), ())),
        preferred_element_type=jnp.float32)
    out_ref[...] = logits + b_ref[...]


def transformer_lm_forward(tokens, w_tied, pos_tbl, stacked,
                           final_ln_w, final_ln_b, logits_b, n_heads,
                           batch_chunks=None, vocab_tile=None):
    """tokens (B, T) int32 -> logits (B, T, V) f32.  cache_len = 0 (no KV cache)."""
    B, T = tokens.shape
    V, D = w_tied.shape
    L = stacked[0].shape[0]
    dh = D // n_heads
    Dm = 4 * D

    if batch_chunks is None:
        batch_chunks = 2 if (B % 2 == 0) else 1    # 2 chunks feed both v7x TCs
    assert B % batch_chunks == 0
    Bc = B // batch_chunks
    BT = B * T
    BcT = Bc * T

    # Embedding gathers are glue (plain JAX); fold batch into the row dimension.
    tok_emb = w_tied[tokens]                               # (B, T, D)
    x0 = (tok_emb + pos_tbl[None, :T, :]).reshape(BT, D).astype(jnp.float32)

    (ln1w, ln1b, wqkv, bqkv, wo, bo, ln2w, ln2b, w1, b1, w2, b2) = stacked

    # Fold 1/sqrt(dh) into the Q columns of the fused QKV projection.
    scale = 1.0 / math.sqrt(dh)
    col_scale = jnp.concatenate([jnp.full((D,), scale, jnp.float32),
                                 jnp.ones((2 * D,), jnp.float32)])
    wqkv_s = (wqkv.astype(jnp.float32) * col_scale).astype(jnp.bfloat16)
    bqkv_s = bqkv * col_scale
    # Output projection reshaped for the head-batched contraction in-kernel.
    wo_r = wo.reshape(L, n_heads, dh, D)

    per_layer3 = lambda bc, l: (l, 0, 0)
    per_layer4 = lambda bc, l: (l, 0, 0, 0)
    const2 = lambda bc, l: (0, 0)

    # ---- fused transformer blocks + final LayerNorm ----
    hidden = pl.pallas_call(
        partial(fused_layers_kernel, n_heads=n_heads, seq_len=T),
        out_shape=jax.ShapeDtypeStruct((BT, D), jnp.float32),
        grid=(batch_chunks, L),
        in_specs=[
            pl.BlockSpec(memory_space=pl.ANY),           # x0 stays in HBM
            pl.BlockSpec((1, 1, D), per_layer3),         # ln1 w
            pl.BlockSpec((1, 1, D), per_layer3),         # ln1 b
            pl.BlockSpec((1, D, 3 * D), per_layer3),     # W_qkv (bf16, scale folded)
            pl.BlockSpec((1, 1, 3 * D), per_layer3),     # b_qkv
            pl.BlockSpec((1, n_heads, dh, D), per_layer4),  # W_o as (H, dh, D) (bf16)
            pl.BlockSpec((1, 1, D), per_layer3),         # b_o
            pl.BlockSpec((1, 1, D), per_layer3),         # ln2 w
            pl.BlockSpec((1, 1, D), per_layer3),         # ln2 b
            pl.BlockSpec((1, D, Dm), per_layer3),        # W1 (bf16)
            pl.BlockSpec((1, 1, Dm), per_layer3),        # b1
            pl.BlockSpec((1, Dm, D), per_layer3),        # W2 (bf16)
            pl.BlockSpec((1, 1, D), per_layer3),         # b2
            pl.BlockSpec((1, D), const2),                # final ln w
            pl.BlockSpec((1, D), const2),                # final ln b
        ],
        out_specs=pl.BlockSpec((BcT, D), lambda bc, l: (bc, 0)),
        scratch_shapes=[pltpu.VMEM((BcT, D), jnp.float32),
                        pltpu.SemaphoreType.DMA],
        compiler_params=pltpu.CompilerParams(
            dimension_semantics=("parallel", "arbitrary"),
            vmem_limit_bytes=56 * 1024 * 1024),          # fits under v7x's 64 MiB
    )(x0, ln1w, ln1b, wqkv_s, bqkv_s, wo_r, bo, ln2w, ln2b, w1, b1, w2, b2,
      final_ln_w, final_ln_b)

    # ---- tied logits head: separate call, tiled ("parallel") over the vocab axis ----
    if vocab_tile is None:
        vocab_tile = V if V <= 512 else 512
    assert V % vocab_tile == 0
    nv = V // vocab_tile

    logits_flat = pl.pallas_call(
        lm_head_kernel,
        out_shape=jax.ShapeDtypeStruct((BT, V), jnp.float32),
        grid=(nv,),
        in_specs=[
            pl.BlockSpec((BT, D), lambda v: (0, 0)),           # LN'd hidden
            pl.BlockSpec((vocab_tile, D), lambda v: (v, 0)),   # tied embedding (bf16)
            pl.BlockSpec((1, vocab_tile), lambda v: (0, v)),   # logits bias
        ],
        out_specs=pl.BlockSpec((BT, vocab_tile), lambda v: (0, v)),
        compiler_params=pltpu.CompilerParams(
            dimension_semantics=("parallel",)),
    )(hidden, w_tied.astype(jnp.bfloat16), logits_b)

    return logits_flat.reshape(B, T, V)


def _reference_forward(tokens, w_tied, pos_tbl, stacked,
                       final_ln_w, final_ln_b, logits_b, n_heads):
    """Pure-JAX f32 reference (same math, un-fused) for a sanity check."""
    B, T = tokens.shape
    V, D = w_tied.shape
    L = stacked[0].shape[0]
    dh = D // n_heads
    x = w_tied[tokens] + pos_tbl[None, :T, :]
    causal = jnp.tril(jnp.ones((T, T), bool))
    for li in range(L):
        (ln1w, ln1b, wqkv, bqkv, wo, bo, ln2w, ln2b, w1, b1, w2, b2) = [
            a[li].astype(jnp.float32) for a in stacked]
        h = _layer_norm(x, ln1w, ln1b)
        qkv = h @ wqkv + bqkv
        q, k, v = qkv[..., :D], qkv[..., D:2 * D], qkv[..., 2 * D:]
        q = q.reshape(B, T, n_heads, dh).transpose(0, 2, 1, 3)
        k = k.reshape(B, T, n_heads, dh).transpose(0, 2, 1, 3)
        v = v.reshape(B, T, n_heads, dh).transpose(0, 2, 1, 3)
        s = jnp.einsum('bhqd,bhkd->bhqk', q, k) / math.sqrt(dh)
        s = jnp.where(causal, s, -1e30)
        p = jax.nn.softmax(s, axis=-1)
        o = jnp.einsum('bhqk,bhkd->bhqd', p, v).transpose(0, 2, 1, 3).reshape(B, T, D)
        x = x + (o @ wo + bo)
        h2 = _layer_norm(x, ln2w, ln2b)
        m = jax.nn.gelu(h2 @ w1 + b1, approximate=True)
        x = x + (m @ w2 + b2)
    x = _layer_norm(x, final_ln_w, final_ln_b)
    return x @ w_tied.T + logits_b


if __name__ == "__main__":
    # Small synthetic config.
    V, D, H, L, BLOCK_SIZE = 128, 64, 4, 2, 16
    B, T = 2, 8
    base_std = 0.02
    scaled_std = base_std / math.sqrt(2 * L)      # ResidualProjection scaling

    key = jax.random.PRNGKey(0)
    keys = iter(jax.random.split(key, 64))

    def nrm(shape, std):
        return jax.random.normal(next(keys), shape, jnp.float32) * std

    # Tied embedding / output-projection weight (V, D), GPT-2 init.
    w_tied = nrm((V, D), base_std)
    pos_tbl = nrm((BLOCK_SIZE, D), base_std)

    ln1w_l, ln1b_l, wqkv_l, bqkv_l, wo_l, bo_l = [], [], [], [], [], []
    ln2w_l, ln2b_l, w1_l, b1_l, w2_l, b2_l = [], [], [], [], [], []
    for _ in range(L):
        wq, wk, wv = nrm((D, D), base_std), nrm((D, D), base_std), nrm((D, D), base_std)
        ln1w_l.append(jnp.ones((1, D), jnp.float32))
        ln1b_l.append(jnp.zeros((1, D), jnp.float32))
        wqkv_l.append(jnp.concatenate([wq, wk, wv], axis=1))          # (D, 3D)
        bqkv_l.append(jnp.zeros((1, 3 * D), jnp.float32))
        wo_l.append(nrm((D, D), scaled_std))                          # residual proj
        bo_l.append(jnp.zeros((1, D), jnp.float32))
        ln2w_l.append(jnp.ones((1, D), jnp.float32))
        ln2b_l.append(jnp.zeros((1, D), jnp.float32))
        w1_l.append(nrm((D, 4 * D), base_std))
        b1_l.append(jnp.zeros((1, 4 * D), jnp.float32))
        w2_l.append(nrm((4 * D, D), scaled_std))                      # residual proj
        b2_l.append(jnp.zeros((1, D), jnp.float32))

    # Stack per-layer params along a leading L axis; weight matrices stored in bf16.
    stacked = (
        jnp.stack(ln1w_l), jnp.stack(ln1b_l),
        jnp.stack(wqkv_l).astype(jnp.bfloat16), jnp.stack(bqkv_l),
        jnp.stack(wo_l).astype(jnp.bfloat16), jnp.stack(bo_l),
        jnp.stack(ln2w_l), jnp.stack(ln2b_l),
        jnp.stack(w1_l).astype(jnp.bfloat16), jnp.stack(b1_l),
        jnp.stack(w2_l).astype(jnp.bfloat16), jnp.stack(b2_l),
    )

    final_ln_w = jnp.ones((1, D), jnp.float32)
    final_ln_b = jnp.zeros((1, D), jnp.float32)
    logits_b = jnp.zeros((1, V), jnp.float32)

    tokens = jax.random.randint(next(keys), (B, T), 0, V, dtype=jnp.int32)

    logits = transformer_lm_forward(tokens, w_tied, pos_tbl, stacked,
                                    final_ln_w, final_ln_b, logits_b, H,
                                    batch_chunks=2)
    jax.block_until_ready(logits)

    assert logits.shape == (B, T, V) and logits.dtype == jnp.float32
    assert bool(jnp.all(jnp.isfinite(logits)))

    # Loose sanity check vs pure-JAX f32 reference (bf16 matmuls + approx recip).
    ref = _reference_forward(tokens, w_tied, pos_tbl, stacked,
                             final_ln_w, final_ln_b, logits_b, H)
    max_err = float(jnp.max(jnp.abs(logits - ref)))
    assert max_err < 2e-2, f"max abs error vs reference too large: {max_err}"

    print("KERNEL_OK")
</pallas_src>

<mosaic_0001>
module attributes {stable_mosaic.version = 11 : i64} {
  func.func @fused_layers_kernel(%arg0: i32, %arg1: i32, %arg2: memref<16x64xf32, #tpu.memory_space<any>>, %arg3: memref<1x1x64xf32, #tpu.memory_space<vmem>>, %arg4: memref<1x1x64xf32, #tpu.memory_space<vmem>>, %arg5: memref<1x64x192xbf16, #tpu.memory_space<vmem>>, %arg6: memref<1x1x192xf32, #tpu.memory_space<vmem>>, %arg7: memref<1x4x16x64xbf16, #tpu.memory_space<vmem>>, %arg8: memref<1x1x64xf32, #tpu.memory_space<vmem>>, %arg9: memref<1x1x64xf32, #tpu.memory_space<vmem>>, %arg10: memref<1x1x64xf32, #tpu.memory_space<vmem>>, %arg11: memref<1x64x256xbf16, #tpu.memory_space<vmem>>, %arg12: memref<1x1x256xf32, #tpu.memory_space<vmem>>, %arg13: memref<1x256x64xbf16, #tpu.memory_space<vmem>>, %arg14: memref<1x1x64xf32, #tpu.memory_space<vmem>>, %arg15: memref<1x64xf32, #tpu.memory_space<vmem>>, %arg16: memref<1x64xf32, #tpu.memory_space<vmem>>, %arg17: memref<8x64xf32, #tpu.memory_space<vmem>>, %arg18: memref<8x64xf32, #tpu.memory_space<vmem>>, %arg19: memref<!tpu.dma_semaphore, #tpu.memory_space<semaphore_mem>>) attributes {dimension_semantics = [#tpu.dimension_semantics<parallel>, #tpu.dimension_semantics<arbitrary>], iteration_bounds = array<i64: 2, 2>, scalar_prefetch = 0 : i64, scratch_operands = 2 : i64, tpu.core_type = #tpu.core_type<tc>, window_params = [{}, {transform_indices = @transform_1, window_bounds = array<i64: 1, 1, 64>}, {transform_indices = @transform_2, window_bounds = array<i64: 1, 1, 64>}, {transform_indices = @transform_3, window_bounds = array<i64: 1, 64, 192>}, {transform_indices = @transform_4, window_bounds = array<i64: 1, 1, 192>}, {transform_indices = @transform_5, window_bounds = array<i64: 1, 4, 16, 64>}, {transform_indices = @transform_6, window_bounds = array<i64: 1, 1, 64>}, {transform_indices = @transform_7, window_bounds = array<i64: 1, 1, 64>}, {transform_indices = @transform_8, window_bounds = array<i64: 1, 1, 64>}, {transform_indices = @transform_9, window_bounds = array<i64: 1, 64, 256>}, {transform_indices = @transform_10, window_bounds = array<i64: 1, 1, 256>}, {transform_indices = @transform_11, window_bounds = array<i64: 1, 256, 64>}, {transform_indices = @transform_12, window_bounds = array<i64: 1, 1, 64>}, {pipeline_mode = #tpu.pipeline_mode<synchronous>, transform_indices = @transform_13, window_bounds = array<i64: 1, 64>}, {pipeline_mode = #tpu.pipeline_mode<synchronous>, transform_indices = @transform_14, window_bounds = array<i64: 1, 64>}, {transform_indices = @transform_15, window_bounds = array<i64: 8, 64>}]} {
    %c0_i32 = arith.constant 0 : i32
    %0 = arith.cmpi eq, %arg1, %c0_i32 : i32
    %1 = arith.extui %0 : i1 to i32
    %c0_i32_0 = arith.constant 0 : i32
    %2 = arith.cmpi ne, %1, %c0_i32_0 : i32
    scf.if %2 {
      %c8_i32 = arith.constant 8 : i32
      %141 = arith.muli %arg0, %c8_i32 : i32
      %142 = tpu.assume_multiple %141, 8 : i32
      %c0_i32_65 = arith.constant 0 : i32
      %143 = tpu.memref_slice %arg2[%142, %c0_i32_65] : memref<16x64xf32, #tpu.memory_space<any>> -> memref<8x64xf32, #tpu.memory_space<any>>
      tpu.enqueue_dma source(%143 : memref<8x64xf32, #tpu.memory_space<any>>) target(%arg18 : memref<8x64xf32, #tpu.memory_space<vmem>>) target_semaphore(%arg19 : memref<!tpu.dma_semaphore, #tpu.memory_space<semaphore_mem>>)
      %c0_i32_66 = arith.constant 0 : i32
      %144 = tpu.memref_slice %arg2[%142, %c0_i32_66] : memref<16x64xf32, #tpu.memory_space<any>> -> memref<8x64xf32, #tpu.memory_space<any>>
      tpu.wait_dma2 semaphore(%arg19 : memref<!tpu.dma_semaphore, #tpu.memory_space<semaphore_mem>>) src(%144 : memref<8x64xf32, #tpu.memory_space<any>>) dst(%arg18 : memref<8x64xf32, #tpu.memory_space<vmem>>)
    } else {
    }
    %c0 = arith.constant 0 : index
    %c0_1 = arith.constant 0 : index
    %3 = vector.load %arg18[%c0, %c0_1] : memref<8x64xf32, #tpu.memory_space<vmem>>, vector<8x64xf32>
    %c0_2 = arith.constant 0 : index
    %c0_3 = arith.constant 0 : index
    %c0_4 = arith.constant 0 : index
    %4 = vector.load %arg3[%c0_2, %c0_3, %c0_4] : memref<1x1x64xf32, #tpu.memory_space<vmem>>, vector<1x1x64xf32>
    %5 = vector.shape_cast %4 : vector<1x1x64xf32> to vector<1x64xf32>
    %c0_5 = arith.constant 0 : index
    %c0_6 = arith.constant 0 : index
    %c0_7 = arith.constant 0 : index
    %6 = vector.load %arg4[%c0_5, %c0_6, %c0_7] : memref<1x1x64xf32, #tpu.memory_space<vmem>>, vector<1x1x64xf32>
    %7 = vector.shape_cast %6 : vector<1x1x64xf32> to vector<1x64xf32>
    %cst = arith.constant dense<0.000000e+00> : vector<8xf32>
    %8 = vector.multi_reduction <add>, %3, %cst [1] : vector<8x64xf32> to vector<8xf32>
    %9 = vector.shape_cast %8 : vector<8xf32> to vector<8x1xf32>
    %cst_8 = arith.constant 6.400000e+01 : f32
    %10 = vector.broadcast %cst_8 : f32 to vector<8x1xf32>
    %11 = arith.divf %9, %10 : vector<8x1xf32>
    %12 = vector.broadcast %11 : vector<8x1xf32> to vector<8x64xf32>
    %13 = arith.subf %3, %12 : vector<8x64xf32>
    %14 = arith.mulf %13, %13 : vector<8x64xf32>
    %cst_9 = arith.constant dense<0.000000e+00> : vector<8xf32>
    %15 = vector.multi_reduction <add>, %14, %cst_9 [1] : vector<8x64xf32> to vector<8xf32>
    %16 = vector.shape_cast %15 : vector<8xf32> to vector<8x1xf32>
    %cst_10 = arith.constant 6.400000e+01 : f32
    %17 = vector.broadcast %cst_10 : f32 to vector<8x1xf32>
    %18 = arith.divf %16, %17 : vector<8x1xf32>
    %19 = vector.broadcast %11 : vector<8x1xf32> to vector<8x64xf32>
    %20 = arith.subf %3, %19 : vector<8x64xf32>
    %cst_11 = arith.constant 9.99999974E-6 : f32
    %21 = vector.broadcast %cst_11 : f32 to vector<8x1xf32>
    %22 = arith.addf %18, %21 : vector<8x1xf32>
    %23 = math.rsqrt %22 : vector<8x1xf32>
    %24 = vector.broadcast %23 : vector<8x1xf32> to vector<8x64xf32>
    %25 = arith.mulf %20, %24 : vector<8x64xf32>
    %26 = vector.broadcast %5 : vector<1x64xf32> to vector<8x64xf32>
    %27 = arith.mulf %25, %26 : vector<8x64xf32>
    %28 = vector.broadcast %7 : vector<1x64xf32> to vector<8x64xf32>
    %29 = arith.addf %27, %28 : vector<8x64xf32>
    %30 = arith.truncf %29 : vector<8x64xf32> to vector<8x64xbf16>
    %c0_12 = arith.constant 0 : index
    %c0_13 = arith.constant 0 : index
    %c0_14 = arith.constant 0 : index
    %31 = vector.load %arg5[%c0_12, %c0_13, %c0_14] : memref<1x64x192xbf16, #tpu.memory_space<vmem>>, vector<1x64x192xbf16>
    %32 = vector.shape_cast %31 : vector<1x64x192xbf16> to vector<64x192xbf16>
    %cst_15 = arith.constant dense<0.000000e+00> : vector<8x192xf32>
    %33 = tpu.matmul %30, %32, %cst_15 {dimension_numbers = #tpu.dot_dimension_numbers<[1], [0], [0], [1], [0, 0, 1, 1], [], []>} : vector<8x64xbf16>, vector<64x192xbf16>, vector<8x192xf32> -> vector<8x192xf32>
    %c0_16 = arith.constant 0 : index
    %c0_17 = arith.constant 0 : index
    %c0_18 = arith.constant 0 : index
    %34 = vector.load %arg6[%c0_16, %c0_17, %c0_18] : memref<1x1x192xf32, #tpu.memory_space<vmem>>, vector<1x1x192xf32>
    %35 = vector.shape_cast %34 : vector<1x1x192xf32> to vector<1x192xf32>
    %36 = vector.broadcast %35 : vector<1x192xf32> to vector<8x192xf32>
    %37 = arith.addf %33, %36 : vector<8x192xf32>
    %38 = vector.extract_strided_slice %37 {offsets = [0, 0], sizes = [8, 64], strides = [1, 1]} : vector<8x192xf32> to vector<8x64xf32>
    %39 = arith.truncf %38 : vector<8x64xf32> to vector<8x64xbf16>
    %40 = vector.extract_strided_slice %37 {offsets = [0, 64], sizes = [8, 64], strides = [1, 1]} : vector<8x192xf32> to vector<8x64xf32>
    %41 = arith.truncf %40 : vector<8x64xf32> to vector<8x64xbf16>
    %42 = vector.extract_strided_slice %37 {offsets = [0, 128], sizes = [8, 64], strides = [1, 1]} : vector<8x192xf32> to vector<8x64xf32>
    %43 = arith.truncf %42 : vector<8x64xf32> to vector<8x64xbf16>
    %44 = vector.shape_cast %39 : vector<8x64xbf16> to vector<8x4x16xbf16>
    %45 = tpu.transpose %44, [1, 0, 2] : vector<8x4x16xbf16> -> vector<4x8x16xbf16>
    %46 = vector.shape_cast %41 : vector<8x64xbf16> to vector<8x4x16xbf16>
    %47 = tpu.transpose %46, [1, 0, 2] : vector<8x4x16xbf16> -> vector<4x8x16xbf16>
    %48 = vector.shape_cast %43 : vector<8x64xbf16> to vector<8x4x16xbf16>
    %49 = tpu.transpose %48, [1, 0, 2] : vector<8x4x16xbf16> -> vector<4x8x16xbf16>
    "tpu.trace_start"() <{level = 10 : i32, message = "hqd,hkd->hqk"}> : () -> ()
    %cst_19 = arith.constant dense<0.000000e+00> : vector<4x8x8xf32>
    %50 = tpu.matmul %45, %47, %cst_19 {dimension_numbers = #tpu.dot_dimension_numbers<[2], [2], [1], [1], [0, 0, 0, 1, 1, 1], [0], [0]>} : vector<4x8x16xbf16>, vector<4x8x16xbf16>, vector<4x8x8xf32> -> vector<4x8x8xf32>
    "tpu.trace_stop"() : () -> ()
    %51 = tpu.iota {dimensions = array<i32: 0>} : vector<8x8xi32>
    %52 = tpu.iota {dimensions = array<i32: 1>} : vector<8x8xi32>
    %53 = arith.cmpi sge, %51, %52 : vector<8x8xi32>
    %54 = vector.shape_cast %53 : vector<8x8xi1> to vector<1x8x8xi1>
    %cst_20 = arith.constant -1.000000e+30 : f32
    %55 = vector.shape_cast %54 : vector<1x8x8xi1> to vector<1x8x8xi1>
    %56 = vector.broadcast %55 : vector<1x8x8xi1> to vector<4x8x8xi1>
    %57 = vector.broadcast %cst_20 : f32 to vector<4x8x8xf32>
    %58 = arith.select %56, %50, %57 : vector<4x8x8xi1>, vector<4x8x8xf32>
    %cst_21 = arith.constant dense<0xFF800000> : vector<4x8xf32>
    %59 = vector.multi_reduction <maximumf>, %58, %cst_21 [2] : vector<4x8x8xf32> to vector<4x8xf32>
    %60 = vector.shape_cast %59 : vector<4x8xf32> to vector<4x8x1xf32>
    %61 = vector.broadcast %60 : vector<4x8x1xf32> to vector<4x8x8xf32>
    %62 = arith.subf %58, %61 : vector<4x8x8xf32>
    %63 = math.exp %62 : vector<4x8x8xf32>
    %cst_22 = arith.constant dense<0.000000e+00> : vector<4x8xf32>
    %64 = vector.multi_reduction <add>, %63, %cst_22 [2] : vector<4x8x8xf32> to vector<4x8xf32>
    %65 = vector.shape_cast %64 : vector<4x8xf32> to vector<4x8x1xf32>
    %66 = tpu.reciprocal %65 {approx = true} : vector<4x8x1xf32> -> vector<4x8x1xf32>
    %67 = vector.broadcast %66 : vector<4x8x1xf32> to vector<4x8x8xf32>
    %68 = arith.mulf %63, %67 : vector<4x8x8xf32>
    %69 = arith.truncf %68 : vector<4x8x8xf32> to vector<4x8x8xbf16>
    "tpu.trace_start"() <{level = 10 : i32, message = "hqk,hkd->hqd"}> : () -> ()
    %cst_23 = arith.constant dense<0.000000e+00> : vector<4x8x16xf32>
    %70 = tpu.matmul %69, %49, %cst_23 {dimension_numbers = #tpu.dot_dimension_numbers<[2], [1], [1], [2], [0, 0, 0, 1, 1, 2], [0], [0]>} : vector<4x8x8xbf16>, vector<4x8x16xbf16>, vector<4x8x16xf32> -> vector<4x8x16xf32>
    "tpu.trace_stop"() : () -> ()
    %71 = arith.truncf %70 : vector<4x8x16xf32> to vector<4x8x16xbf16>
    %c0_24 = arith.constant 0 : index
    %c0_25 = arith.constant 0 : index
    %c0_26 = arith.constant 0 : index
    %c0_27 = arith.constant 0 : index
    %72 = vector.load %arg7[%c0_24, %c0_25, %c0_26, %c0_27] : memref<1x4x16x64xbf16, #tpu.memory_space<vmem>>, vector<1x4x16x64xbf16>
    %73 = vector.shape_cast %72 : vector<1x4x16x64xbf16> to vector<4x16x64xbf16>
    "tpu.trace_start"() <{level = 10 : i32, message = "hqd,hdn->hqn"}> : () -> ()
    %cst_28 = arith.constant dense<0.000000e+00> : vector<4x8x64xf32>
    %74 = tpu.matmul %71, %73, %cst_28 {dimension_numbers = #tpu.dot_dimension_numbers<[2], [1], [1], [2], [0, 0, 0, 1, 1, 2], [0], [0]>} : vector<4x8x16xbf16>, vector<4x16x64xbf16>, vector<4x8x64xf32> -> vector<4x8x64xf32>
    "tpu.trace_stop"() : () -> ()
    %cst_29 = arith.constant dense<0.000000e+00> : vector<8x64xf32>
    %75 = vector.multi_reduction <add>, %74, %cst_29 [0] : vector<4x8x64xf32> to vector<8x64xf32>
    %c0_30 = arith.constant 0 : index
    %c0_31 = arith.constant 0 : index
    %c0_32 = arith.constant 0 : index
    %76 = vector.load %arg8[%c0_30, %c0_31, %c0_32] : memref<1x1x64xf32, #tpu.memory_space<vmem>>, vector<1x1x64xf32>
    %77 = vector.shape_cast %76 : vector<1x1x64xf32> to vector<1x64xf32>
    %78 = vector.broadcast %77 : vector<1x64xf32> to vector<8x64xf32>
    %79 = arith.addf %75, %78 : vector<8x64xf32>
    %80 = arith.addf %3, %79 : vector<8x64xf32>
    %c0_33 = arith.constant 0 : index
    %c0_34 = arith.constant 0 : index
    %c0_35 = arith.constant 0 : index
    %81 = vector.load %arg9[%c0_33, %c0_34, %c0_35] : memref<1x1x64xf32, #tpu.memory_space<vmem>>, vector<1x1x64xf32>
    %82 = vector.shape_cast %81 : vector<1x1x64xf32> to vector<1x64xf32>
    %c0_36 = arith.constant 0 : index
    %c0_37 = arith.constant 0 : index
    %c0_38 = arith.constant 0 : index
    %83 = vector.load %arg10[%c0_36, %c0_37, %c0_38] : memref<1x1x64xf32, #tpu.memory_space<vmem>>, vector<1x1x64xf32>
    %84 = vector.shape_cast %83 : vector<1x1x64xf32> to vector<1x64xf32>
    %cst_39 = arith.constant dense<0.000000e+00> : vector<8xf32>
    %85 = vector.multi_reduction <add>, %80, %cst_39 [1] : vector<8x64xf32> to vector<8xf32>
    %86 = vector.shape_cast %85 : vector<8xf32> to vector<8x1xf32>
    %cst_40 = arith.constant 6.400000e+01 : f32
    %87 = vector.broadcast %cst_40 : f32 to vector<8x1xf32>
    %88 = arith.divf %86, %87 : vector<8x1xf32>
    %89 = vector.broadcast %88 : vector<8x1xf32> to vector<8x64xf32>
    %90 = arith.subf %80, %89 : vector<8x64xf32>
    %91 = arith.mulf %90, %90 : vector<8x64xf32>
    %cst_41 = arith.constant dense<0.000000e+00> : vector<8xf32>
    %92 = vector.multi_reduction <add>, %91, %cst_41 [1] : vector<8x64xf32> to vector<8xf32>
    %93 = vector.shape_cast %92 : vector<8xf32> to vector<8x1xf32>
    %cst_42 = arith.constant 6.400000e+01 : f32
    %94 = vector.broadcast %cst_42 : f32 to vector<8x1xf32>
    %95 = arith.divf %93, %94 : vector<8x1xf32>
    %96 = vector.broadcast %88 : vector<8x1xf32> to vector<8x64xf32>
    %97 = arith.subf %80, %96 : vector<8x64xf32>
    %cst_43 = arith.constant 9.99999974E-6 : f32
    %98 = vector.broadcast %cst_43 : f32 to vector<8x1xf32>
    %99 = arith.addf %95, %98 : vector<8x1xf32>
    %100 = math.rsqrt %99 : vector<8x1xf32>
    %101 = vector.broadcast %100 : vector<8x1xf32> to vector<8x64xf32>
    %102 = arith.mulf %97, %101 : vector<8x64xf32>
    %103 = vector.broadcast %82 : vector<1x64xf32> to vector<8x64xf32>
    %104 = arith.mulf %102, %103 : vector<8x64xf32>
    %105 = vector.broadcast %84 : vector<1x64xf32> to vector<8x64xf32>
    %106 = arith.addf %104, %105 : vector<8x64xf32>
    %107 = arith.truncf %106 : vector<8x64xf32> to vector<8x64xbf16>
    %c0_44 = arith.constant 0 : index
    %c0_45 = arith.constant 0 : index
    %c0_46 = arith.constant 0 : index
    %108 = vector.load %arg11[%c0_44, %c0_45, %c0_46] : memref<1x64x256xbf16, #tpu.memory_space<vmem>>, vector<1x64x256xbf16>
    %109 = vector.shape_cast %108 : vector<1x64x256xbf16> to vector<64x256xbf16>
    %cst_47 = arith.constant dense<0.000000e+00> : vector<8x256xf32>
    %110 = tpu.matmul %107, %109, %cst_47 {dimension_numbers = #tpu.dot_dimension_numbers<[1], [0], [0], [1], [0, 0, 1, 1], [], []>} : vector<8x64xbf16>, vector<64x256xbf16>, vector<8x256xf32> -> vector<8x256xf32>
    %c0_48 = arith.constant 0 : index
    %c0_49 = arith.constant 0 : index
    %c0_50 = arith.constant 0 : index
    %111 = vector.load %arg12[%c0_48, %c0_49, %c0_50] : memref<1x1x256xf32, #tpu.memory_space<vmem>>, vector<1x1x256xf32>
    %112 = vector.shape_cast %111 : vector<1x1x256xf32> to vector<1x256xf32>
    %113 = vector.broadcast %112 : vector<1x256xf32> to vector<8x256xf32>
    %114 = arith.addf %110, %113 : vector<8x256xf32>
    %115 = arith.mulf %114, %114 : vector<8x256xf32>
    %116 = arith.mulf %114, %115 : vector<8x256xf32>
    %cst_51 = arith.constant 4.471500e-02 : f32
    %117 = vector.broadcast %cst_51 : f32 to vector<8x256xf32>
    %118 = arith.mulf %117, %116 : vector<8x256xf32>
    %119 = arith.addf %114, %118 : vector<8x256xf32>
    %cst_52 = arith.constant 0.797884583 : f32
    %120 = vector.broadcast %cst_52 : f32 to vector<8x256xf32>
    %121 = arith.mulf %120, %119 : vector<8x256xf32>
    %122 = math.tanh %121 : vector<8x256xf32>
    %cst_53 = arith.constant 1.000000e+00 : f32
    %123 = vector.broadcast %cst_53 : f32 to vector<8x256xf32>
    %124 = arith.addf %123, %122 : vector<8x256xf32>
    %cst_54 = arith.constant 5.000000e-01 : f32
    %125 = vector.broadcast %cst_54 : f32 to vector<8x256xf32>
    %126 = arith.mulf %125, %124 : vector<8x256xf32>
    %127 = arith.mulf %114, %126 : vector<8x256xf32>
    %128 = arith.truncf %127 : vector<8x256xf32> to vector<8x256xbf16>
    %c0_55 = arith.constant 0 : index
    %c0_56 = arith.constant 0 : index
    %c0_57 = arith.constant 0 : index
    %129 = vector.load %arg13[%c0_55, %c0_56, %c0_57] : memref<1x256x64xbf16, #tpu.memory_space<vmem>>, vector<1x256x64xbf16>
    %130 = vector.shape_cast %129 : vector<1x256x64xbf16> to vector<256x64xbf16>
    %cst_58 = arith.constant dense<0.000000e+00> : vector<8x64xf32>
    %131 = tpu.matmul %128, %130, %cst_58 {dimension_numbers = #tpu.dot_dimension_numbers<[1], [0], [0], [1], [0, 0, 1, 1], [], []>} : vector<8x256xbf16>, vector<256x64xbf16>, vector<8x64xf32> -> vector<8x64xf32>
    %c0_59 = arith.constant 0 : index
    %c0_60 = arith.constant 0 : index
    %c0_61 = arith.constant 0 : index
    %132 = vector.load %arg14[%c0_59, %c0_60, %c0_61] : memref<1x1x64xf32, #tpu.memory_space<vmem>>, vector<1x1x64xf32>
    %133 = vector.shape_cast %132 : vector<1x1x64xf32> to vector<1x64xf32>
    %134 = vector.broadcast %133 : vector<1x64xf32> to vector<8x64xf32>
    %135 = arith.addf %131, %134 : vector<8x64xf32>
    %136 = arith.addf %80, %135 : vector<8x64xf32>
    %c0_62 = arith.constant 0 : index
    %c0_63 = arith.constant 0 : index
    %137 = vector.load %arg18[%c0_62, %c0_63] : memref<8x64xf32, #tpu.memory_space<vmem>>, vector<8x64xf32>
    tpu.vector_store %arg18[%c0_62, %c0_63], %136 {strides = array<i32>} : memref<8x64xf32, #tpu.memory_space<vmem>>, vector<8x64xf32>,
    %c1_i32 = arith.constant 1 : i32
    %138 = arith.cmpi eq, %arg1, %c1_i32 : i32
    %139 = arith.extui %138 : i1 to i32
    %c0_i32_64 = arith.constant 0 : i32
    %140 = arith.cmpi ne, %139, %c0_i32_64 : i32
    scf.if %140 {
      %c0_65 = arith.constant 0 : index
      %c0_66 = arith.constant 0 : index
      %141 = vector.load %arg15[%c0_65, %c0_66] : memref<1x64xf32, #tpu.memory_space<vmem>>, vector<1x64xf32>
      %c0_67 = arith.constant 0 : index
      %c0_68 = arith.constant 0 : index
      %142 = vector.load %arg16[%c0_67, %c0_68] : memref<1x64xf32, #tpu.memory_space<vmem>>, vector<1x64xf32>
      %cst_69 = arith.constant dense<0.000000e+00> : vector<8xf32>
      %143 = vector.multi_reduction <add>, %136, %cst_69 [1] : vector<8x64xf32> to vector<8xf32>
      %144 = vector.shape_cast %143 : vector<8xf32> to vector<8x1xf32>
      %cst_70 = arith.constant 6.400000e+01 : f32
      %145 = vector.broadcast %cst_70 : f32 to vector<8x1xf32>
      %146 = arith.divf %144, %145 : vector<8x1xf32>
      %147 = vector.broadcast %146 : vector<8x1xf32> to vector<8x64xf32>
      %148 = arith.subf %136, %147 : vector<8x64xf32>
      %149 = arith.mulf %148, %148 : vector<8x64xf32>
      %cst_71 = arith.constant dense<0.000000e+00> : vector<8xf32>
      %150 = vector.multi_reduction <add>, %149, %cst_71 [1] : vector<8x64xf32> to vector<8xf32>
      %151 = vector.shape_cast %150 : vector<8xf32> to vector<8x1xf32>
      %cst_72 = arith.constant 6.400000e+01 : f32
      %152 = vector.broadcast %cst_72 : f32 to vector<8x1xf32>
      %153 = arith.divf %151, %152 : vector<8x1xf32>
      %154 = vector.broadcast %146 : vector<8x1xf32> to vector<8x64xf32>
      %155 = arith.subf %136, %154 : vector<8x64xf32>
      %cst_73 = arith.constant 9.99999974E-6 : f32
      %156 = vector.broadcast %cst_73 : f32 to vector<8x1xf32>
      %157 = arith.addf %153, %156 : vector<8x1xf32>
      %158 = math.rsqrt %157 : vector<8x1xf32>
      %159 = vector.broadcast %158 : vector<8x1xf32> to vector<8x64xf32>
      %160 = arith.mulf %155, %159 : vector<8x64xf32>
      %161 = vector.broadcast %141 : vector<1x64xf32> to vector<8x64xf32>
      %162 = arith.mulf %160, %161 : vector<8x64xf32>
      %163 = vector.broadcast %142 : vector<1x64xf32> to vector<8x64xf32>
      %164 = arith.addf %162, %163 : vector<8x64xf32>
      %c0_74 = arith.constant 0 : index
      %c0_75 = arith.constant 0 : index
      %165 = vector.load %arg17[%c0_74, %c0_75] : memref<8x64xf32, #tpu.memory_space<vmem>>, vector<8x64xf32>
      tpu.vector_store %arg17[%c0_74, %c0_75], %164 {strides = array<i32>} : memref<8x64xf32, #tpu.memory_space<vmem>>, vector<8x64xf32>,
    } else {
    }
    return
  }
  func.func @transform_1(%arg0: i32, %arg1: i32) -> (i32, i32, i32) {
    %c0_i32 = arith.constant 0 : i32
    %c0_i32_0 = arith.constant 0 : i32
    %c0_i32_1 = arith.constant 0 : i32
    return %arg1, %c0_i32, %c0_i32_0 : i32, i32, i32
  }
  func.func @transform_2(%arg0: i32, %arg1: i32) -> (i32, i32, i32) {
    %c0_i32 = arith.constant 0 : i32
    %c0_i32_0 = arith.constant 0 : i32
    %c0_i32_1 = arith.constant 0 : i32
    return %arg1, %c0_i32, %c0_i32_0 : i32, i32, i32
  }
  func.func @transform_3(%arg0: i32, %arg1: i32) -> (i32, i32, i32) {
    %c0_i32 = arith.constant 0 : i32
    %c0_i32_0 = arith.constant 0 : i32
    %c0_i32_1 = arith.constant 0 : i32
    return %arg1, %c0_i32, %c0_i32_0 : i32, i32, i32
  }
  func.func @transform_4(%arg0: i32, %arg1: i32) -> (i32, i32, i32) {
    %c0_i32 = arith.constant 0 : i32
    %c0_i32_0 = arith.constant 0 : i32
    %c0_i32_1 = arith.constant 0 : i32
    return %arg1, %c0_i32, %c0_i32_0 : i32, i32, i32
  }
  func.func @transform_5(%arg0: i32, %arg1: i32) -> (i32, i32, i32, i32) {
    %c0_i32 = arith.constant 0 : i32
    %c0_i32_0 = arith.constant 0 : i32
    %c0_i32_1 = arith.constant 0 : i32
    %c0_i32_2 = arith.constant 0 : i32
    return %arg1, %c0_i32, %c0_i32_0, %c0_i32_1 : i32, i32, i32, i32
  }
  func.func @transform_6(%arg0: i32, %arg1: i32) -> (i32, i32, i32) {
    %c0_i32 = arith.constant 0 : i32
    %c0_i32_0 = arith.constant 0 : i32
    %c0_i32_1 = arith.constant 0 : i32
    return %arg1, %c0_i32, %c0_i32_0 : i32, i32, i32
  }
  func.func @transform_7(%arg0: i32, %arg1: i32) -> (i32, i32, i32) {
    %c0_i32 = arith.constant 0 : i32
    %c0_i32_0 = arith.constant 0 : i32
    %c0_i32_1 = arith.constant 0 : i32
    return %arg1, %c0_i32, %c0_i32_0 : i32, i32, i32
  }
  func.func @transform_8(%arg0: i32, %arg1: i32) -> (i32, i32, i32) {
    %c0_i32 = arith.constant 0 : i32
    %c0_i32_0 = arith.constant 0 : i32
    %c0_i32_1 = arith.constant 0 : i32
    return %arg1, %c0_i32, %c0_i32_0 : i32, i32, i32
  }
  func.func @transform_9(%arg0: i32, %arg1: i32) -> (i32, i32, i32) {
    %c0_i32 = arith.constant 0 : i32
    %c0_i32_0 = arith.constant 0 : i32
    %c0_i32_1 = arith.constant 0 : i32
    return %arg1, %c0_i32, %c0_i32_0 : i32, i32, i32
  }
  func.func @transform_10(%arg0: i32, %arg1: i32) -> (i32, i32, i32) {
    %c0_i32 = arith.constant 0 : i32
    %c0_i32_0 = arith.constant 0 : i32
    %c0_i32_1 = arith.constant 0 : i32
    return %arg1, %c0_i32, %c0_i32_0 : i32, i32, i32
  }
  func.func @transform_11(%arg0: i32, %arg1: i32) -> (i32, i32, i32) {
    %c0_i32 = arith.constant 0 : i32
    %c0_i32_0 = arith.constant 0 : i32
    %c0_i32_1 = arith.constant 0 : i32
    return %arg1, %c0_i32, %c0_i32_0 : i32, i32, i32
  }
  func.func @transform_12(%arg0: i32, %arg1: i32) -> (i32, i32, i32) {
    %c0_i32 = arith.constant 0 : i32
    %c0_i32_0 = arith.constant 0 : i32
    %c0_i32_1 = arith.constant 0 : i32
    return %arg1, %c0_i32, %c0_i32_0 : i32, i32, i32
  }
  func.func @transform_13(%arg0: i32, %arg1: i32) -> (i32, i32) {
    %c0_i32 = arith.constant 0 : i32
    %c0_i32_0 = arith.constant 0 : i32
    %c0_i32_1 = arith.constant 0 : i32
    return %c0_i32, %c0_i32_0 : i32, i32
  }
  func.func @transform_14(%arg0: i32, %arg1: i32) -> (i32, i32) {
    %c0_i32 = arith.constant 0 : i32
    %c0_i32_0 = arith.constant 0 : i32
    %c0_i32_1 = arith.constant 0 : i32
    return %c0_i32, %c0_i32_0 : i32, i32
  }
  func.func @transform_15(%arg0: i32, %arg1: i32) -> (i32, i32) {
    %c0_i32 = arith.constant 0 : i32
    %c0_i32_0 = arith.constant 0 : i32
    return %arg0, %c0_i32 : i32, i32
  }
}

</mosaic_0001>

<llo_original>
// kernel: tpu_custom_call.1
$region0: #{tpu_custom_call.1}
  #allocation0 [shape = 'u32[]', space=smem, size = 0x4, offset = 0x4, fixed_abs, tag = 'smem constant byte address 0x4 - core index']
  #allocation1 [shape = 'u32[72,128]{1,0:T(1,128)}', space=vmem, size = 0x9000, scoped, tag = 'internal scratch']
  #allocation2 [shape = 'f32[8,64]{1,0:T(8,128)}', space=vmem, size = 0x1000, scoped, tag = 'scratch operand']
  #allocation3 [shape = 's32[1]{0}', space=sflag, size = 0x4, scoped, tag = 'scratch operand']
  #allocation6 [shape = 's32[]', space=sflag, size = 0x4, offset = 0, fixed_abs, tag = 'sflag constant byte address 0x0 - dummy sync flag']
  %s0 = inlined_call_operand.vmem [shape: f32[16,64], index: 0, kind: input, shape index: {}]
  %s1 = inlined_call_operand.vmem [shape: f32[2,1,64], index: 1, kind: input, shape index: {}]
  %s2 = inlined_call_operand.vmem [shape: f32[2,1,64], index: 2, kind: input, shape index: {}]
  %s3 = inlined_call_operand.vmem [shape: bf16[2,64,192], index: 3, kind: input, shape index: {}]
  %s4 = inlined_call_operand.vmem [shape: f32[2,1,192], index: 4, kind: input, shape index: {}]
  %s5 = inlined_call_operand.vmem [shape: bf16[2,4,16,64], index: 5, kind: input, shape index: {}]
  %s6 = inlined_call_operand.vmem [shape: f32[2,1,64], index: 6, kind: input, shape index: {}]
  %s7 = inlined_call_operand.vmem [shape: f32[2,1,64], index: 7, kind: input, shape index: {}]
  %s8 = inlined_call_operand.vmem [shape: f32[2,1,64], index: 8, kind: input, shape index: {}]
  %s9 = inlined_call_operand.vmem [shape: bf16[2,64,256], index: 9, kind: input, shape index: {}]
  %s10 = inlined_call_operand.vmem [shape: f32[2,1,256], index: 10, kind: input, shape index: {}]
  %s11 = inlined_call_operand.vmem [shape: bf16[2,256,64], index: 11, kind: input, shape index: {}]
  %s12 = inlined_call_operand.vmem [shape: f32[2,1,64], index: 12, kind: input, shape index: {}]
  %s13 = inlined_call_operand.vmem [shape: f32[1,64], index: 13, kind: input, shape index: {}]
  %s14 = inlined_call_operand.vmem [shape: f32[1,64], index: 14, kind: input, shape index: {}]
  %s15 = inlined_call_operand.hbm [shape: f32[16,64], index: 15, kind: output, shape index: {}]
  %s16 = sld [smem:[#allocation0]]
  $region131: #{tpu_custom_call.1} parent=0
    _
  %s18 = ssub.s32 1, %s16
  %s19 = scalar_select 0, %s18, %s16
  $region1: #{tpu_custom_call.1} parent=0
    #allocation4 [shape = 'u8[8192]{0}', space=vmem, size = 0x2000, scoped, tag = 'output window, operand 0']
    #allocation5 [shape = 's32[2]{0}', space=sflag, size = 0x8, scoped, tag = 'scoped memory for tpu_custom_call.1']
    %20 = vsyncpa [#allocation5], 0
    %s21 = scalar_lea.sflag [#allocation5], 1
    %22 = vsyncpa %s21, 0
    loop: start=0, step=1, limit=6
    $region2: #{tpu_custom_call.1} parent=1 // loop_pre_header
      _
    $region3: #{tpu_custom_call.1} parent=1 // loop_header
      %s24 = sphi 0, %s28
      %p25 = scmp.ge.s32.totalorder %s24, 6
      %s31 = sphi 0, %s43
      %s32 = sphi 0, %s39
      %s33 = sphi 0, %s31
      %s34 = sphi 0, %s32
      %s35 = sphi 0, %s33
      %s36 = sphi 0, %s34
      %s46 = sphi 0, %s48
      %s49 = sphi 0, %s46
      %s50 = sphi 0, %s49
      %s66 = sphi 0, %s50
      %s72 = sphi 0, %s74
      %s75 = sphi 0, %s72
      %s76 = sphi 0, %s75
      %s92 = sphi 0, %s76
      %s98 = sphi 0, %s100
      %s101 = sphi 0, %s98
      %s102 = sphi 0, %s101
      %s118 = sphi 0, %s102
      %s124 = sphi 0, %s126
      %s127 = sphi 0, %s124
      %s128 = sphi 0, %s127
      %s144 = sphi 0, %s128
      %s150 = sphi 0, %s152
      %s153 = sphi 0, %s150
      %s154 = sphi 0, %s153
      %s170 = sphi 0, %s154
      %s176 = sphi 0, %s178
      %s179 = sphi 0, %s176
      %s180 = sphi 0, %s179
      %s196 = sphi 0, %s180
      %s202 = sphi 0, %s204
      %s205 = sphi 0, %s202
      %s206 = sphi 0, %s205
      %s222 = sphi 0, %s206
      %s228 = sphi 0, %s230
      %s231 = sphi 0, %s228
      %s232 = sphi 0, %s231
      %s248 = sphi 0, %s232
      %s254 = sphi 0, %s256
      %s257 = sphi 0, %s254
      %s258 = sphi 0, %s257
      %s274 = sphi 0, %s258
      %s280 = sphi 0, %s282
      %s283 = sphi 0, %s280
      %s284 = sphi 0, %s283
      %s300 = sphi 0, %s284
      %s306 = sphi 0, %s308
      %s309 = sphi 0, %s306
      %s310 = sphi 0, %s309
      %s326 = sphi 0, %s310
      %s332 = sphi 0, %s334
      %s335 = sphi 0, %s332
      %s336 = sphi 0, %s335
      %s352 = sphi 0, %s336
      %s356 = sphi 0, %s356
      %s358 = sphi 0, %s356
      %s359 = sphi 0, %s358
      %s373 = sphi 0, %s359
      %s377 = sphi 0, %s377
      %s379 = sphi 0, %s377
      %s380 = sphi 0, %s379
      %s394 = sphi 0, %s380
      %s400 = sphi 0, %s402
      %s403 = sphi 0, %s400
      %s404 = sphi 0, %s403
      %s420 = sphi 0, %s404
    $region4: #{tpu_custom_call.1} parent=1 // loop_header_branch
      %27 = sbr.rel (%p25) target = $region8
    $region5: #{tpu_custom_call.1} parent=1 // loop_body
      %s29 = ssub.s32 %s24, 1
      %s30 = ssub.s32 %s24, 2
      %s37 = sadd.s32 1, %s32
      %p38 = scmp.ge.s32.totalorder %s37, 2
      %s39 = scalar_select %p38, 0, %s37
      %s40 = sadd.s32 1, %s31
      %s41 = scalar_select %p38, %s40, %s31
      %p42 = scmp.ge.s32.totalorder %s41, 2
      %s43 = scalar_select %p42, 0, %s41
      %s44 = ssub.s32 %s32, %s39
      %p45 = scmp.eq.s32.totalorder %s44, 0
      %s47 = sadd.s32 %s46, 1
      %s48 = scalar_select %p45, %s46, %s47
      %p51 = pneg %p45
      %p52 = scmp.eq.s32.totalorder %s24, 3
      %p53 = por %p51, %p52
      %p54 = scmp.ne.s32.totalorder %s46, %s49
      %p55 = scmp.eq.s32.totalorder %s24, 0
      %p56 = por %p54, %p55
      %p57 = scmp.ne.s32.totalorder %s46, %s49
      %p58 = scmp.eq.s32.totalorder %s29, 3
      %p59 = por %p57, %p58
      %p60 = scmp.ne.s32.totalorder %s49, %s50
      %p61 = scmp.eq.s32.totalorder %s29, 0
      %p62 = por %p60, %p61
      %p63 = scmp.ne.s32.totalorder %s49, %s50
      %p64 = scmp.eq.s32.totalorder %s30, 3
      %p65 = por %p63, %p64
      %p67 = scmp.ne.s32.totalorder %s50, %s66
      %p68 = scmp.eq.s32.totalorder %s30, 0
      %p69 = por %p67, %p68
      %s70 = ssub.s32 %s32, %s39
      %p71 = scmp.eq.s32.totalorder %s70, 0
      %s73 = sadd.s32 %s72, 1
      %s74 = scalar_select %p71, %s72, %s73
      %p77 = pneg %p71
      %p78 = scmp.eq.s32.totalorder %s24, 3
      %p79 = por %p77, %p78
      %p80 = scmp.ne.s32.totalorder %s72, %s75
      %p81 = scmp.eq.s32.totalorder %s24, 0
      %p82 = por %p80, %p81
      %p83 = scmp.ne.s32.totalorder %s72, %s75
      %p84 = scmp.eq.s32.totalorder %s29, 3
      %p85 = por %p83, %p84
      %p86 = scmp.ne.s32.totalorder %s75, %s76
      %p87 = scmp.eq.s32.totalorder %s29, 0
      %p88 = por %p86, %p87
      %p89 = scmp.ne.s32.totalorder %s75, %s76
      %p90 = scmp.eq.s32.totalorder %s30, 3
      %p91 = por %p89, %p90
      %p93 = scmp.ne.s32.totalorder %s76, %s92
      %p94 = scmp.eq.s32.totalorder %s30, 0
      %p95 = por %p93, %p94
      %s96 = ssub.s32 %s32, %s39
      %p97 = scmp.eq.s32.totalorder %s96, 0
      %s99 = sadd.s32 %s98, 1
      %s100 = scalar_select %p97, %s98, %s99
      %p103 = pneg %p97
      %p104 = scmp.eq.s32.totalorder %s24, 3
      %p105 = por %p103, %p104
      %p106 = scmp.ne.s32.totalorder %s98, %s101
      %p107 = scmp.eq.s32.totalorder %s24, 0
      %p108 = por %p106, %p107
      %p109 = scmp.ne.s32.totalorder %s98, %s101
      %p110 = scmp.eq.s32.totalorder %s29, 3
      %p111 = por %p109, %p110
      %p112 = scmp.ne.s32.totalorder %s101, %s102
      %p113 = scmp.eq.s32.totalorder %s29, 0
      %p114 = por %p112, %p113
      %p115 = scmp.ne.s32.totalorder %s101, %s102
      %p116 = scmp.eq.s32.totalorder %s30, 3
      %p117 = por %p115, %p116
      %p119 = scmp.ne.s32.totalorder %s102, %s118
      %p120 = scmp.eq.s32.totalorder %s30, 0
      %p121 = por %p119, %p120
      %s122 = ssub.s32 %s32, %s39
      %p123 = scmp.eq.s32.totalorder %s122, 0
      %s125 = sadd.s32 %s124, 1
      %s126 = scalar_select %p123, %s124, %s125
      %p129 = pneg %p123
      %p130 = scmp.eq.s32.totalorder %s24, 3
      %p131 = por %p129, %p130
      %p132 = scmp.ne.s32.totalorder %s124, %s127
      %p133 = scmp.eq.s32.totalorder %s24, 0
      %p134 = por %p132, %p133
      %p135 = scmp.ne.s32.totalorder %s124, %s127
      %p136 = scmp.eq.s32.totalorder %s29, 3
      %p137 = por %p135, %p136
      %p138 = scmp.ne.s32.totalorder %s127, %s128
      %p139 = scmp.eq.s32.totalorder %s29, 0
      %p140 = por %p138, %p139
      %p141 = scmp.ne.s32.totalorder %s127, %s128
      %p142 = scmp.eq.s32.totalorder %s30, 3
      %p143 = por %p141, %p142
      %p145 = scmp.ne.s32.totalorder %s128, %s144
      %p146 = scmp.eq.s32.totalorder %s30, 0
      %p147 = por %p145, %p146
      %s148 = ssub.s32 %s32, %s39
      %p149 = scmp.eq.s32.totalorder %s148, 0
      %s151 = sadd.s32 %s150, 1
      %s152 = scalar_select %p149, %s150, %s151
      %p155 = pneg %p149
      %p156 = scmp.eq.s32.totalorder %s24, 3
      %p157 = por %p155, %p156
      %p158 = scmp.ne.s32.totalorder %s150, %s153
      %p159 = scmp.eq.s32.totalorder %s24, 0
      %p160 = por %p158, %p159
      %p161 = scmp.ne.s32.totalorder %s150, %s153
      %p162 = scmp.eq.s32.totalorder %s29, 3
      %p163 = por %p161, %p162
      %p164 = scmp.ne.s32.totalorder %s153, %s154
      %p165 = scmp.eq.s32.totalorder %s29, 0
      %p166 = por %p164, %p165
      %p167 = scmp.ne.s32.totalorder %s153, %s154
      %p168 = scmp.eq.s32.totalorder %s30, 3
      %p169 = por %p167, %p168
      %p171 = scmp.ne.s32.totalorder %s154, %s170
      %p172 = scmp.eq.s32.totalorder %s30, 0
      %p173 = por %p171, %p172
      %s174 = ssub.s32 %s32, %s39
      %p175 = scmp.eq.s32.totalorder %s174, 0
      %s177 = sadd.s32 %s176, 1
      %s178 = scalar_select %p175, %s176, %s177
      %p181 = pneg %p175
      %p182 = scmp.eq.s32.totalorder %s24, 3
      %p183 = por %p181, %p182
      %p184 = scmp.ne.s32.totalorder %s176, %s179
      %p185 = scmp.eq.s32.totalorder %s24, 0
      %p186 = por %p184, %p185
      %p187 = scmp.ne.s32.totalorder %s176, %s179
      %p188 = scmp.eq.s32.totalorder %s29, 3
      %p189 = por %p187, %p188
      %p190 = scmp.ne.s32.totalorder %s179, %s180
      %p191 = scmp.eq.s32.totalorder %s29, 0
      %p192 = por %p190, %p191
      %p193 = scmp.ne.s32.totalorder %s179, %s180
      %p194 = scmp.eq.s32.totalorder %s30, 3
      %p195 = por %p193, %p194
      %p197 = scmp.ne.s32.totalorder %s180, %s196
      %p198 = scmp.eq.s32.totalorder %s30, 0
      %p199 = por %p197, %p198
      %s200 = ssub.s32 %s32, %s39
      %p201 = scmp.eq.s32.totalorder %s200, 0
      %s203 = sadd.s32 %s202, 1
      %s204 = scalar_select %p201, %s202, %s203
      %p207 = pneg %p201
      %p208 = scmp.eq.s32.totalorder %s24, 3
      %p209 = por %p207, %p208
      %p210 = scmp.ne.s32.totalorder %s202, %s205
      %p211 = scmp.eq.s32.totalorder %s24, 0
      %p212 = por %p210, %p211
      %p213 = scmp.ne.s32.totalorder %s202, %s205
      %p214 = scmp.eq.s32.totalorder %s29, 3
      %p215 = por %p213, %p214
      %p216 = scmp.ne.s32.totalorder %s205, %s206
      %p217 = scmp.eq.s32.totalorder %s29, 0
      %p218 = por %p216, %p217
      %p219 = scmp.ne.s32.totalorder %s205, %s206
      %p220 = scmp.eq.s32.totalorder %s30, 3
      %p221 = por %p219, %p220
      %p223 = scmp.ne.s32.totalorder %s206, %s222
      %p224 = scmp.eq.s32.totalorder %s30, 0
      %p225 = por %p223, %p224
      %s226 = ssub.s32 %s32, %s39
      %p227 = scmp.eq.s32.totalorder %s226, 0
      %s229 = sadd.s32 %s228, 1
      %s230 = scalar_select %p227, %s228, %s229
      %p233 = pneg %p227
      %p234 = scmp.eq.s32.totalorder %s24, 3
      %p235 = por %p233, %p234
      %p236 = scmp.ne.s32.totalorder %s228, %s231
      %p237 = scmp.eq.s32.totalorder %s24, 0
      %p238 = por %p236, %p237
      %p239 = scmp.ne.s32.totalorder %s228, %s231
      %p240 = scmp.eq.s32.totalorder %s29, 3
      %p241 = por %p239, %p240
      %p242 = scmp.ne.s32.totalorder %s231, %s232
      %p243 = scmp.eq.s32.totalorder %s29, 0
      %p244 = por %p242, %p243
      %p245 = scmp.ne.s32.totalorder %s231, %s232
      %p246 = scmp.eq.s32.totalorder %s30, 3
      %p247 = por %p245, %p246
      %p249 = scmp.ne.s32.totalorder %s232, %s248
      %p250 = scmp.eq.s32.totalorder %s30, 0
      %p251 = por %p249, %p250
      %s252 = ssub.s32 %s32, %s39
      %p253 = scmp.eq.s32.totalorder %s252, 0
      %s255 = sadd.s32 %s254, 1
      %s256 = scalar_select %p253, %s254, %s255
      %p259 = pneg %p253
      %p260 = scmp.eq.s32.totalorder %s24, 3
      %p261 = por %p259, %p260
      %p262 = scmp.ne.s32.totalorder %s254, %s257
      %p263 = scmp.eq.s32.totalorder %s24, 0
      %p264 = por %p262, %p263
      %p265 = scmp.ne.s32.totalorder %s254, %s257
      %p266 = scmp.eq.s32.totalorder %s29, 3
      %p267 = por %p265, %p266
      %p268 = scmp.ne.s32.totalorder %s257, %s258
      %p269 = scmp.eq.s32.totalorder %s29, 0
      %p270 = por %p268, %p269
      %p271 = scmp.ne.s32.totalorder %s257, %s258
      %p272 = scmp.eq.s32.totalorder %s30, 3
      %p273 = por %p271, %p272
      %p275 = scmp.ne.s32.totalorder %s258, %s274
      %p276 = scmp.eq.s32.totalorder %s30, 0
      %p277 = por %p275, %p276
      %s278 = ssub.s32 %s32, %s39
      %p279 = scmp.eq.s32.totalorder %s278, 0
      %s281 = sadd.s32 %s280, 1
      %s282 = scalar_select %p279, %s280, %s281
      %p285 = pneg %p279
      %p286 = scmp.eq.s32.totalorder %s24, 3
      %p287 = por %p285, %p286
      %p288 = scmp.ne.s32.totalorder %s280, %s283
      %p289 = scmp.eq.s32.totalorder %s24, 0
      %p290 = por %p288, %p289
      %p291 = scmp.ne.s32.totalorder %s280, %s283
      %p292 = scmp.eq.s32.totalorder %s29, 3
      %p293 = por %p291, %p292
      %p294 = scmp.ne.s32.totalorder %s283, %s284
      %p295 = scmp.eq.s32.totalorder %s29, 0
      %p296 = por %p294, %p295
      %p297 = scmp.ne.s32.totalorder %s283, %s284
      %p298 = scmp.eq.s32.totalorder %s30, 3
      %p299 = por %p297, %p298
      %p301 = scmp.ne.s32.totalorder %s284, %s300
      %p302 = scmp.eq.s32.totalorder %s30, 0
      %p303 = por %p301, %p302
      %s304 = ssub.s32 %s32, %s39
      %p305 = scmp.eq.s32.totalorder %s304, 0
      %s307 = sadd.s32 %s306, 1
      %s308 = scalar_select %p305, %s306, %s307
      %p311 = pneg %p305
      %p312 = scmp.eq.s32.totalorder %s24, 3
      %p313 = por %p311, %p312
      %p314 = scmp.ne.s32.totalorder %s306, %s309
      %p315 = scmp.eq.s32.totalorder %s24, 0
      %p316 = por %p314, %p315
      %p317 = scmp.ne.s32.totalorder %s306, %s309
      %p318 = scmp.eq.s32.totalorder %s29, 3
      %p319 = por %p317, %p318
      %p320 = scmp.ne.s32.totalorder %s309, %s310
      %p321 = scmp.eq.s32.totalorder %s29, 0
      %p322 = por %p320, %p321
      %p323 = scmp.ne.s32.totalorder %s309, %s310
      %p324 = scmp.eq.s32.totalorder %s30, 3
      %p325 = por %p323, %p324
      %p327 = scmp.ne.s32.totalorder %s310, %s326
      %p328 = scmp.eq.s32.totalorder %s30, 0
      %p329 = por %p327, %p328
      %s330 = ssub.s32 %s32, %s39
      %p331 = scmp.eq.s32.totalorder %s330, 0
      %s333 = sadd.s32 %s332, 1
      %s334 = scalar_select %p331, %s332, %s333
      %p337 = pneg %p331
      %p338 = scmp.eq.s32.totalorder %s24, 3
      %p339 = por %p337, %p338
      %p340 = scmp.ne.s32.totalorder %s332, %s335
      %p341 = scmp.eq.s32.totalorder %s24, 0
      %p342 = por %p340, %p341
      %p343 = scmp.ne.s32.totalorder %s332, %s335
      %p344 = scmp.eq.s32.totalorder %s29, 3
      %p345 = por %p343, %p344
      %p346 = scmp.ne.s32.totalorder %s335, %s336
      %p347 = scmp.eq.s32.totalorder %s29, 0
      %p348 = por %p346, %p347
      %p349 = scmp.ne.s32.totalorder %s335, %s336
      %p350 = scmp.eq.s32.totalorder %s30, 3
      %p351 = por %p349, %p350
      %p353 = scmp.ne.s32.totalorder %s336, %s352
      %p354 = scmp.eq.s32.totalorder %s30, 0
      %p355 = por %p353, %p354
      %s357 = sadd.s32 %s356, 1
      %p360 = scmp.eq.s32.totalorder %s24, 3
      %p361 = scmp.ne.s32.totalorder %s356, %s358
      %p362 = scmp.eq.s32.totalorder %s24, 0
      %p363 = por %p361, %p362
      %p364 = scmp.ne.s32.totalorder %s356, %s358
      %p365 = scmp.eq.s32.totalorder %s29, 3
      %p366 = por %p364, %p365
      %p367 = scmp.ne.s32.totalorder %s358, %s359
      %p368 = scmp.eq.s32.totalorder %s29, 0
      %p369 = por %p367, %p368
      %p370 = scmp.ne.s32.totalorder %s358, %s359
      %p371 = scmp.eq.s32.totalorder %s30, 3
      %p372 = por %p370, %p371
      %p374 = scmp.ne.s32.totalorder %s359, %s373
      %p375 = scmp.eq.s32.totalorder %s30, 0
      %p376 = por %p374, %p375
      %s378 = sadd.s32 %s377, 1
      %p381 = scmp.eq.s32.totalorder %s24, 3
      %p382 = scmp.ne.s32.totalorder %s377, %s379
      %p383 = scmp.eq.s32.totalorder %s24, 0
      %p384 = por %p382, %p383
      %p385 = scmp.ne.s32.totalorder %s377, %s379
      %p386 = scmp.eq.s32.totalorder %s29, 3
      %p387 = por %p385, %p386
      %p388 = scmp.ne.s32.totalorder %s379, %s380
      %p389 = scmp.eq.s32.totalorder %s29, 0
      %p390 = por %p388, %p389
      %p391 = scmp.ne.s32.totalorder %s379, %s380
      %p392 = scmp.eq.s32.totalorder %s30, 3
      %p393 = por %p391, %p392
      %p395 = scmp.ne.s32.totalorder %s380, %s394
      %p396 = scmp.eq.s32.totalorder %s30, 0
      %p397 = por %p395, %p396
      %s398 = ssub.s32 %s31, %s43
      %p399 = scmp.eq.s32.totalorder %s398, 0
      %s401 = sadd.s32 %s400, 1
      %s402 = scalar_select %p399, %s400, %s401
      %p405 = pneg %p399
      %p406 = scmp.eq.s32.totalorder %s24, 3
      %p407 = por %p405, %p406
      %p408 = scmp.ne.s32.totalorder %s400, %s403
      %p409 = scmp.eq.s32.totalorder %s24, 0
      %p410 = por %p408, %p409
      %p411 = scmp.ne.s32.totalorder %s400, %s403
      %p412 = scmp.eq.s32.totalorder %s29, 3
      %p413 = por %p411, %p412
      %p414 = scmp.ne.s32.totalorder %s403, %s404
      %p415 = scmp.eq.s32.totalorder %s29, 0
      %p416 = por %p414, %p415
      %p417 = scmp.ne.s32.totalorder %s403, %s404
      %p418 = scmp.eq.s32.totalorder %s30, 3
      %p419 = por %p417, %p418
      %p421 = scmp.ne.s32.totalorder %s404, %s420
      %p422 = scmp.eq.s32.totalorder %s30, 0
      %p423 = por %p421, %p422
      %p424 = scmp.le.s32.totalorder 1, %s24
      %p425 = scmp.lt.s32.totalorder %s24, 5
      %p426 = pnand %p424, %p425
      %p427 = pneg %p426
      // Predicated region
      $region9: #{tpu_custom_call.1} parent=5 // pred_check
        _
      $region10: #{tpu_custom_call.1} parent=5 // pred_check_branch
        %429 = sbr.rel (%p426) target = $region12
      $region11: #{tpu_custom_call.1} parent=5 // pred_region
        %s430 = ssub.s32 %s24, 1
        // Predicated region
        $region13: #{tpu_custom_call.1} parent=11 // pred_check
          %p431 = pneg %p369
        $region14: #{tpu_custom_call.1} parent=11 // pred_check_branch
          %433 = sbr.rel (%p431) target = $region16
        $region15: #{tpu_custom_call.1} parent=11 // pred_region
          _
        $region16: #{tpu_custom_call.1} parent=11 // pred_fallthru
          _
        // Predicated region
        $region17: #{tpu_custom_call.1} parent=11 // pred_check
          %p434 = pneg %p390
        $region18: #{tpu_custom_call.1} parent=11 // pred_check_branch
          %436 = sbr.rel (%p434) target = $region20
        $region19: #{tpu_custom_call.1} parent=11 // pred_region
          _
        $region20: #{tpu_custom_call.1} parent=11 // pred_fallthru
          _
      $region12: #{tpu_custom_call.1} parent=5 // pred_fallthru
        _
      %p437 = scmp.lt.s32.totalorder %s24, 4
      // Predicated region
      $region21: #{tpu_custom_call.1} parent=5 // pred_check
        %p438 = pneg %p437
      $region22: #{tpu_custom_call.1} parent=5 // pred_check_branch
        %440 = sbr.rel (%p438) target = $region24
      $region23: #{tpu_custom_call.1} parent=5 // pred_region
        // Predicated region
        $region25: #{tpu_custom_call.1} parent=23 // pred_check
          %p441 = pneg %p56
        $region26: #{tpu_custom_call.1} parent=23 // pred_check_branch
          %443 = sbr.rel (%p441) target = $region28
        $region27: #{tpu_custom_call.1} parent=23 // pred_region
          %p444 = scmp.lt.s32.totalorder %s32, 1
          %s445 = scalar_select %p444, %s32, 1
          %s446 = scalar_lea.vmem %s1, %s445
        $region28: #{tpu_custom_call.1} parent=23 // pred_fallthru
          _
        // Predicated region
        $region29: #{tpu_custom_call.1} parent=23 // pred_check
          %p447 = pneg %p82
        $region30: #{tpu_custom_call.1} parent=23 // pred_check_branch
          %449 = sbr.rel (%p447) target = $region32
        $region31: #{tpu_custom_call.1} parent=23 // pred_region
          %p450 = scmp.lt.s32.totalorder %s32, 1
          %s451 = scalar_select %p450, %s32, 1
          %s452 = scalar_lea.vmem %s2, %s451
        $region32: #{tpu_custom_call.1} parent=23 // pred_fallthru
          _
        // Predicated region
        $region33: #{tpu_custom_call.1} parent=23 // pred_check
          %p453 = pneg %p108
        $region34: #{tpu_custom_call.1} parent=23 // pred_check_branch
          %455 = sbr.rel (%p453) target = $region36
        $region35: #{tpu_custom_call.1} parent=23 // pred_region
          %p456 = scmp.lt.s32.totalorder %s32, 1
          %s457 = scalar_select %p456, %s32, 1
          %s458 = smul.addr %s457, 16
          %s459 = smul.addr %s458, 4
          %s460 = scalar_lea.vmem %s3, %s459
        $region36: #{tpu_custom_call.1} parent=23 // pred_fallthru
          _
        // Predicated region
        $region37: #{tpu_custom_call.1} parent=23 // pred_check
          %p461 = pneg %p134
        $region38: #{tpu_custom_call.1} parent=23 // pred_check_branch
          %463 = sbr.rel (%p461) target = $region40
        $region39: #{tpu_custom_call.1} parent=23 // pred_region
          %p464 = scmp.lt.s32.totalorder %s32, 1
          %s465 = scalar_select %p464, %s32, 1
          %s466 = smul.addr %s465, 2
          %s467 = scalar_lea.vmem %s4, %s466
        $region40: #{tpu_custom_call.1} parent=23 // pred_fallthru
          _
        // Predicated region
        $region41: #{tpu_custom_call.1} parent=23 // pred_check
          %p468 = pneg %p160
        $region42: #{tpu_custom_call.1} parent=23 // pred_check_branch
          %470 = sbr.rel (%p468) target = $region44
        $region43: #{tpu_custom_call.1} parent=23 // pred_region
          %p471 = scmp.lt.s32.totalorder %s32, 1
          %s472 = scalar_select %p471, %s32, 1
          %s473 = smul.addr %s472, 8
          %s474 = smul.addr %s473, 4
          %s475 = scalar_lea.vmem %s5, %s474
        $region44: #{tpu_custom_call.1} parent=23 // pred_fallthru
          _
        // Predicated region
        $region45: #{tpu_custom_call.1} parent=23 // pred_check
          %p476 = pneg %p186
        $region46: #{tpu_custom_call.1} parent=23 // pred_check_branch
          %478 = sbr.rel (%p476) target = $region48
        $region47: #{tpu_custom_call.1} parent=23 // pred_region
          %p479 = scmp.lt.s32.totalorder %s32, 1
          %s480 = scalar_select %p479, %s32, 1
          %s481 = scalar_lea.vmem %s6, %s480
        $region48: #{tpu_custom_call.1} parent=23 // pred_fallthru
          _
        // Predicated region
        $region49: #{tpu_custom_call.1} parent=23 // pred_check
          %p482 = pneg %p212
        $region50: #{tpu_custom_call.1} parent=23 // pred_check_branch
          %484 = sbr.rel (%p482) target = $region52
        $region51: #{tpu_custom_call.1} parent=23 // pred_region
          %p485 = scmp.lt.s32.totalorder %s32, 1
          %s486 = scalar_select %p485, %s32, 1
          %s487 = scalar_lea.vmem %s7, %s486
        $region52: #{tpu_custom_call.1} parent=23 // pred_fallthru
          _
        // Predicated region
        $region53: #{tpu_custom_call.1} parent=23 // pred_check
          %p488 = pneg %p238
        $region54: #{tpu_custom_call.1} parent=23 // pred_check_branch
          %490 = sbr.rel (%p488) target = $region56
        $region55: #{tpu_custom_call.1} parent=23 // pred_region
          %p491 = scmp.lt.s32.totalorder %s32, 1
          %s492 = scalar_select %p491, %s32, 1
          %s493 = scalar_lea.vmem %s8, %s492
        $region56: #{tpu_custom_call.1} parent=23 // pred_fallthru
          _
        // Predicated region
        $region57: #{tpu_custom_call.1} parent=23 // pred_check
          %p494 = pneg %p264
        $region58: #{tpu_custom_call.1} parent=23 // pred_check_branch
          %496 = sbr.rel (%p494) target = $region60
        $region59: #{tpu_custom_call.1} parent=23 // pred_region
          %p497 = scmp.lt.s32.totalorder %s32, 1
          %s498 = scalar_select %p497, %s32, 1
          %s499 = smul.addr %s498, 16
          %s500 = smul.addr %s499, 4
          %s501 = scalar_lea.vmem %s9, %s500
        $region60: #{tpu_custom_call.1} parent=23 // pred_fallthru
          _
        // Predicated region
        $region61: #{tpu_custom_call.1} parent=23 // pred_check
          %p502 = pneg %p290
        $region62: #{tpu_custom_call.1} parent=23 // pred_check_branch
          %504 = sbr.rel (%p502) target = $region64
        $region63: #{tpu_custom_call.1} parent=23 // pred_region
          %p505 = scmp.lt.s32.totalorder %s32, 1
          %s506 = scalar_select %p505, %s32, 1
          %s507 = smul.addr %s506, 2
          %s508 = scalar_lea.vmem %s10, %s507
        $region64: #{tpu_custom_call.1} parent=23 // pred_fallthru
          _
        // Predicated region
        $region65: #{tpu_custom_call.1} parent=23 // pred_check
          %p509 = pneg %p316
        $region66: #{tpu_custom_call.1} parent=23 // pred_check_branch
          %511 = sbr.rel (%p509) target = $region68
        $region67: #{tpu_custom_call.1} parent=23 // pred_region
          %p512 = scmp.lt.s32.totalorder %s32, 1
          %s513 = scalar_select %p512, %s32, 1
          %s514 = smul.addr %s513, 32
          %s515 = smul.addr %s514, 4
          %s516 = scalar_lea.vmem %s11, %s515
        $region68: #{tpu_custom_call.1} parent=23 // pred_fallthru
          _
        // Predicated region
        $region69: #{tpu_custom_call.1} parent=23 // pred_check
          %p517 = pneg %p342
        $region70: #{tpu_custom_call.1} parent=23 // pred_check_branch
          %519 = sbr.rel (%p517) target = $region72
        $region71: #{tpu_custom_call.1} parent=23 // pred_region
          %p520 = scmp.lt.s32.totalorder %s32, 1
          %s521 = scalar_select %p520, %s32, 1
          %s522 = scalar_lea.vmem %s12, %s521
        $region72: #{tpu_custom_call.1} parent=23 // pred_fallthru
          _
      $region24: #{tpu_custom_call.1} parent=5 // pred_fallthru
        _
      %p523 = scmp.le.s32.totalorder 1, %s24
      %p524 = scmp.lt.s32.totalorder %s24, 5
      %p525 = pnand %p523, %p524
      %p526 = pneg %p525
      // Predicated region
      $region73: #{tpu_custom_call.1} parent=5 // pred_check
        _
      $region74: #{tpu_custom_call.1} parent=5 // pred_check_branch
        %528 = sbr.rel (%p525) target = $region76
      $region75: #{tpu_custom_call.1} parent=5 // pred_region
        %s529 = ssub.s32 %s24, 1
        %p530 = scmp.lt.s32.totalorder %s34, 1
        %s531 = scalar_select %p530, %s34, 1
        %s532 = scalar_lea.vmem %s1, %s531
        %p533 = pneg %p62
        %p534 = pneg %p59
        %p535 = scmp.lt.s32.totalorder %s34, 1
        %s536 = scalar_select %p535, %s34, 1
        %s537 = scalar_lea.vmem %s2, %s536
        %p538 = pneg %p88
        %p539 = pneg %p85
        %p540 = scmp.lt.s32.totalorder %s34, 1
        %s541 = scalar_select %p540, %s34, 1
        %s542 = smul.addr %s541, 16
        %s543 = smul.addr %s542, 4
        %s544 = scalar_lea.vmem %s3, %s543
        %p545 = pneg %p114
        %p546 = pneg %p111
        %p547 = scmp.lt.s32.totalorder %s34, 1
        %s548 = scalar_select %p547, %s34, 1
        %s549 = smul.addr %s548, 2
        %s550 = scalar_lea.vmem %s4, %s549
        %p551 = pneg %p140
        %p552 = pneg %p137
        %p553 = scmp.lt.s32.totalorder %s34, 1
        %s554 = scalar_select %p553, %s34, 1
        %s555 = smul.addr %s554, 8
        %s556 = smul.addr %s555, 4
        %s557 = scalar_lea.vmem %s5, %s556
        %p558 = pneg %p166
        %p559 = pneg %p163
        %p560 = scmp.lt.s32.totalorder %s34, 1
        %s561 = scalar_select %p560, %s34, 1
        %s562 = scalar_lea.vmem %s6, %s561
        %p563 = pneg %p192
        %p564 = pneg %p189
        %p565 = scmp.lt.s32.totalorder %s34, 1
        %s566 = scalar_select %p565, %s34, 1
        %s567 = scalar_lea.vmem %s7, %s566
        %p568 = pneg %p218
        %p569 = pneg %p215
        %p570 = scmp.lt.s32.totalorder %s34, 1
        %s571 = scalar_select %p570, %s34, 1
        %s572 = scalar_lea.vmem %s8, %s571
        %p573 = pneg %p244
        %p574 = pneg %p241
        %p575 = scmp.lt.s32.totalorder %s34, 1
        %s576 = scalar_select %p575, %s34, 1
        %s577 = smul.addr %s576, 16
        %s578 = smul.addr %s577, 4
        %s579 = scalar_lea.vmem %s9, %s578
        %p580 = pneg %p270
        %p581 = pneg %p267
        %p582 = scmp.lt.s32.totalorder %s34, 1
        %s583 = scalar_select %p582, %s34, 1
        %s584 = smul.addr %s583, 2
        %s585 = scalar_lea.vmem %s10, %s584
        %p586 = pneg %p296
        %p587 = pneg %p293
        %p588 = scmp.lt.s32.totalorder %s34, 1
        %s589 = scalar_select %p588, %s34, 1
        %s590 = smul.addr %s589, 32
        %s591 = smul.addr %s590, 4
        %s592 = scalar_lea.vmem %s11, %s591
        %p593 = pneg %p322
        %p594 = pneg %p319
        %p595 = scmp.lt.s32.totalorder %s34, 1
        %s596 = scalar_select %p595, %s34, 1
        %s597 = scalar_lea.vmem %s12, %s596
        %p598 = pneg %p348
        %p599 = pneg %p345
        %p600 = pneg %p369
        %p601 = pneg %p366
        %p602 = pneg %p390
        %p603 = pneg %p387
        %p604 = pneg %p416
        %p605 = pneg %p413
        %s606 = sand.u32 %s403, 1
        %s607 = scalar_lea.sflag [#allocation5], %s606
        %s608 = sand.u32 %s403, 1
        %s609 = smul.addr %s608, 8
        %s610 = scalar_lea.vmem [#allocation4], %s609
        %p611 = scmp.lt.s32.totalorder %s34, 1
        %s612 = scalar_select %p611, %s34, 1
        %s613 = scalar_lea.vmem %s1, %s612
        %p614 = scmp.lt.s32.totalorder %s34, 1
        %s615 = scalar_select %p614, %s34, 1
        %s616 = scalar_lea.vmem %s2, %s615
        %p617 = scmp.lt.s32.totalorder %s34, 1
        %s618 = scalar_select %p617, %s34, 1
        %s619 = smul.addr %s618, 16
        %s620 = smul.addr %s619, 4
        %s621 = scalar_lea.vmem %s3, %s620
        %p622 = scmp.lt.s32.totalorder %s34, 1
        %s623 = scalar_select %p622, %s34, 1
        %s624 = smul.addr %s623, 2
        %s625 = scalar_lea.vmem %s4, %s624
        %p626 = scmp.lt.s32.totalorder %s34, 1
        %s627 = scalar_select %p626, %s34, 1
        %s628 = smul.addr %s627, 8
        %s629 = smul.addr %s628, 4
        %s630 = scalar_lea.vmem %s5, %s629
        %p631 = scmp.lt.s32.totalorder %s34, 1
        %s632 = scalar_select %p631, %s34, 1
        %s633 = scalar_lea.vmem %s6, %s632
        %p634 = scmp.lt.s32.totalorder %s34, 1
        %s635 = scalar_select %p634, %s34, 1
        %s636 = scalar_lea.vmem %s7, %s635
        %p637 = scmp.lt.s32.totalorder %s34, 1
        %s638 = scalar_select %p637, %s34, 1
        %s639 = scalar_lea.vmem %s8, %s638
        %p640 = scmp.lt.s32.totalorder %s34, 1
        %s641 = scalar_select %p640, %s34, 1
        %s642 = smul.addr %s641, 16
        %s643 = smul.addr %s642, 4
        %s644 = scalar_lea.vmem %s9, %s643
        %p645 = scmp.lt.s32.totalorder %s34, 1
        %s646 = scalar_select %p645, %s34, 1
        %s647 = smul.addr %s646, 2
        %s648 = scalar_lea.vmem %s10, %s647
        %p649 = scmp.lt.s32.totalorder %s34, 1
        %s650 = scalar_select %p649, %s34, 1
        %s651 = smul.addr %s650, 32
        %s652 = smul.addr %s651, 4
        %s653 = scalar_lea.vmem %s11, %s652
        %p654 = scmp.lt.s32.totalorder %s34, 1
        %s655 = scalar_select %p654, %s34, 1
        %s656 = scalar_lea.vmem %s12, %s655
        %p658 = scmp.eq.s32.totalorder %s34, 0
        // Predicated region
        $region77: #{tpu_custom_call.1} parent=75 // pred_check
          %p659 = pneg %p658
        $region78: #{tpu_custom_call.1} parent=75 // pred_check_branch
          %661 = sbr.rel (%p659) target = $region80
        $region79: #{tpu_custom_call.1} parent=75 // pred_region
          %s662 = smul.u32 %s33, 8
          %s663 = scalar_lea.vmem %s0, %s662
          // Predicated region
          $region81: #{tpu_custom_call.1} parent=79 // pred_check
            _
          $region82: #{tpu_custom_call.1} parent=79 // pred_check_branch
            %665 = sbr.rel (0) target = $region84
          $region83: #{tpu_custom_call.1} parent=79 // pred_region
            // Predicated region
            $region96: #{tpu_custom_call.1} parent=83 // pred_check
              _
            $region97: #{tpu_custom_call.1} parent=83 // pred_check_branch
              %681 = sbr.rel (0) target = $region99
            $region98: #{tpu_custom_call.1} parent=83 // pred_region
              loop: start=0, step=1, limit=1
              $region100: #{tpu_custom_call.1} parent=98 // loop_pre_header
                _
              $region101: #{tpu_custom_call.1} parent=98 // loop_header
                %s683 = sphi 0, %s687
                %p684 = scmp.ge.s32.totalorder %s683, 1
                %s688 = sphi %s663, %s663
                %s689 = sphi [#allocation2], [#allocation2]
              $region102: #{tpu_custom_call.1} parent=98 // loop_header_branch
                %686 = sbr.rel (%p684) target = $region106
              $region103: #{tpu_custom_call.1} parent=98 // loop_body
                %v690 = vld [vmem:[%s688] sm:$0xff]
                %691 = vst [vmem:[%s689] sm:$0xff] %v690
              $region104: #{tpu_custom_call.1} parent=98 // loop_footer
                %s687 = sadd.s32 1, %s683
              $region105: #{tpu_custom_call.1} parent=98 // loop_footer_branch
                %682 = sbr.rel target = $region101
              $region106: #{tpu_custom_call.1} parent=98 // loop_exit
                _
            $region99: #{tpu_custom_call.1} parent=83 // pred_fallthru
              _
            // Predicated region
            $region107: #{tpu_custom_call.1} parent=83 // pred_check
              _
            $region108: #{tpu_custom_call.1} parent=83 // pred_check_branch
              %693 = sbr.rel target = $region110
            $region109: #{tpu_custom_call.1} parent=83 // pred_region
              _
            $region110: #{tpu_custom_call.1} parent=83 // pred_fallthru
              _
          $region84: #{tpu_custom_call.1} parent=79 // pred_fallthru
            _
          // Predicated region
          $region85: #{tpu_custom_call.1} parent=79 // pred_check
            _
          $region86: #{tpu_custom_call.1} parent=79 // pred_check_branch
            %667 = sbr.rel target = $region88
          $region87: #{tpu_custom_call.1} parent=79 // pred_region
            %s669 = ssub.s32 256, 1
            loop: start=0, step=1, limit=1
            $region89: #{tpu_custom_call.1} parent=87 // loop_pre_header
              _
            $region90: #{tpu_custom_call.1} parent=87 // loop_header
              %s671 = sphi 0, %s675
              %p672 = scmp.ge.s32.totalorder %s671, 1
              %s676 = sphi %s663, %s663
              %s677 = sphi [#allocation2], [#allocation2]
            $region91: #{tpu_custom_call.1} parent=87 // loop_header_branch
              %674 = sbr.rel (%p672) target = $region95
            $region92: #{tpu_custom_call.1} parent=87 // loop_body
              %v678 = vld [vmem:[%s676] sm:%s669]
              %679 = vst [vmem:[%s677] sm:%s669] %v678
            $region93: #{tpu_custom_call.1} parent=87 // loop_footer
              %s675 = sadd.s32 1, %s671
            $region94: #{tpu_custom_call.1} parent=87 // loop_footer_branch
              %670 = sbr.rel target = $region90
            $region95: #{tpu_custom_call.1} parent=87 // loop_exit
              _
          $region88: #{tpu_custom_call.1} parent=79 // pred_fallthru
            _
          // Predicated region
          $region111: #{tpu_custom_call.1} parent=79 // pred_check
            _
          $region112: #{tpu_custom_call.1} parent=79 // pred_check_branch
            %696 = sbr.rel (0) target = $region114
          $region113: #{tpu_custom_call.1} parent=79 // pred_region
            %697 = vsyncadd [#allocation3], 128
          $region114: #{tpu_custom_call.1} parent=79 // pred_fallthru
            _
          %s698 = smul.u32 8, 1
          %s699 = sshll.u32 %s698, 4
          %700 = dma.done [#allocation3], %s699
        $region80: #{tpu_custom_call.1} parent=75 // pred_fallthru
          _
        %v701 = vld [vmem:[#allocation2] sm:$0xff]
        %v702 = vld [vmem:[%s613] sm:$0x1]
        %v703 = vld [vmem:[%s616] sm:$0x1]
        %vm704 = vcmask 523264
        %v705 = vsel %vm704, %v701, 0.0
        %706 = vadd.xlane.f32.xlu0 %v705
        %v707 = vpop.xlane.xlu0 %706
        %v708 = vrcp.pop 64.0
        %v709 = vmul.f32 64.0, %v708
        %v710 = vsub.f32 1.0, %v709
        %v711 = vmul.f32 %v708, %v710
        %v712 = vadd.f32 %v708, %v711
        %vm713 = vweird.f32 %v708
        %v714 = vsel %vm713, %v708, %v712
        %v715 = vmul.f32 %v707, %v714
        %v716 = vsub.f32 %v701, %v715
        %v717 = vmul.f32 %v716, %v716
        %v718 = vsel %vm704, %v717, 0.0
        %719 = vadd.xlane.f32.xlu0 %v718
        %v720 = vpop.xlane.xlu0 %719
        %v721 = vmul.f32 %v720, %v714
        %v722 = vadd.f32 %v721, 1e-05
        %v723 = vrsqrt.pop %v722
        %v724 = vmul.f32 %v723, %v722
        %v725 = vmul.f32 %v724, %v723
        %v726 = vmul.f32 0.5, %v725
        %v727 = vsub.f32 1.5, %v726
        %v728 = vmul.f32 %v723, %v727
        %vm729 = vweird.f32 %v722
        %vm730 = vweird.f32 %v723
        %vm731 = vmor %vm729, %vm730
        %v732 = vsel %vm731, %v723, %v728
        %v733 = vmul.f32 %v716, %v732
        %v735 = vperm.slane %v702, 0
        %v737 = vmul.f32 %v733, %v735
        %v739 = vperm.slane %v703, 0
        %v741 = vadd.f32 %v737, %v739
        %v742 = vpack.c.bf16 %v741, %v741
        %v743 = vld [vmem:[%s621] sm:$0xff]
        %v744 = vld [vmem:[%s621 + $0x8] sm:$0xff]
        %v745 = vld [vmem:[%s621 + $0x10] sm:$0xff]
        %v746 = vld [vmem:[%s621 + $0x18] sm:$0xff]
        %v747 = vld [vmem:[%s621 + $0x20] sm:$0xff]
        %v748 = vld [vmem:[%s621 + $0x28] sm:$0xff]
        %v749 = vld [vmem:[%s621 + $0x30] sm:$0xff]
        %v750 = vld [vmem:[%s621 + $0x38] sm:$0xff]
        %v751 = vld [vmem:[%s625] sm:$0x3]
        %v753 = vperm.slane %v751, 0
        %v754 = vperm.slane %v751, 1
        %v765 = vunpack.c.l.b16 %v743
        %v766 = vunpack.c.h.b16 %v743
        %v767 = vunpack.c.l.b16 %v744
        %v768 = vunpack.c.h.b16 %v744
        %v769 = vunpack.c.l.b16 %v745
        %v770 = vunpack.c.h.b16 %v745
        %v771 = vunpack.c.l.b16 %v746
        %v772 = vunpack.c.h.b16 %v746
        %v773 = vunpack.c.l.b16 %v747
        %v774 = vunpack.c.h.b16 %v747
        %v775 = vunpack.c.l.b16 %v748
        %v776 = vunpack.c.h.b16 %v748
        %v777 = vunpack.c.l.b16 %v749
        %v778 = vunpack.c.h.b16 %v749
        %v779 = vunpack.c.l.b16 %v750
        %v780 = vunpack.c.h.b16 %v750
        %v781 = vpack.c.b16 %v767, %v765
        %v782 = vpack.c.b16 %v768, %v766
        %v783 = vpack.c.b16 %v771, %v769
        %v784 = vpack.c.b16 %v772, %v770
        %v785 = vpack.c.b16 %v775, %v773
        %v786 = vpack.c.b16 %v776, %v774
        %v787 = vpack.c.b16 %v779, %v777
        %v788 = vpack.c.b16 %v780, %v778
        %v798 = vsel %vm704, %v742, 0
        %800 = vmatpush.bf16.msra.mxu0 0
        %801 = vmatpush.bf16.msra.mxu0 0
        %802 = vmatpush.bf16.msra.mxu0 0
        %803 = vmatpush.bf16.msra.mxu0 0
        %804 = vmatpush.bf16.msra.mxu0 %v787
        %805 = vmatpush.bf16.msra.mxu0 %v785
        %806 = vmatpush.bf16.msra.mxu0 %v783
        %807 = vmatpush.bf16.msra.mxu0 %v781
        %808 = vmatmul.bf16.gmra.mxu0 %v798
        %v809 = vpop.f32.mrf.mxu0
        %v810 = vadd.f32 %v753, %v809
        %v811 = vpop.f32.mrf.mxu0
        %812 = vdwg.mxu0
        %813 = vmatpush.bf16.msra.mxu0 0
        %814 = vmatpush.bf16.msra.mxu0 0
        %815 = vmatpush.bf16.msra.mxu0 0
        %816 = vmatpush.bf16.msra.mxu0 0
        %817 = vmatpush.bf16.msra.mxu0 %v788
        %818 = vmatpush.bf16.msra.mxu0 %v786
        %819 = vmatpush.bf16.msra.mxu0 %v784
        %820 = vmatpush.bf16.msra.mxu0 %v782
        %821 = vmatmul.bf16.gmra.mxu0 %v798
        %v822 = vpop.f32.mrf.mxu0
        %v823 = vadd.f32 %v754, %v822
        %v824 = vpop.f32.mrf.mxu0
        %825 = vdwg.mxu0
        %v826 = vpack.c.bf16 %v810, %v810
        %v827 = vpack.c.bf16 %v823, %v823
        %829 = vrot.lane.b32.xlu0 %v826, 112
        %v830 = vpop.permute.xlu0 %829
        %831 = vrot.lane.b32.xlu0 %v826, 96
        %v832 = vpop.permute.xlu0 %831
        %833 = vrot.lane.b32.xlu0 %v826, 80
        %v834 = vpop.permute.xlu0 %833
        %v837 = vpack.i.b16 %v830, %v826
        %v838 = vshrl.u32 %v826, 16
        %v839 = vshrl.u32 %v830, 16
        %v840 = vpack.i.b16 %v839, %v838
        %v843 = vpack.i.b16 %v834, %v832
        %v844 = vshrl.u32 %v832, 16
        %v845 = vshrl.u32 %v834, 16
        %v846 = vpack.i.b16 %v845, %v844
        %v849 = vunpack.c.l.s4 1983009808
        %v850 = vunpack.c.0.s8 %v849
        %v851 = vperm.slane %v837, %v850
        %v854 = vunpack.c.l.s4 1983009808
        %v855 = vunpack.c.0.s8 %v854
        %v856 = vperm.slane %v843, %v855
        %v857 = vrot.slane %v856, 4
        %vm858 = vcmask 1047556
        %v859 = vsel %vm858, %v857, %v851
        %v860 = vrot.slane %v851, 4
        %v861 = vsel %vm858, %v856, %v860
        %v863 = vunpack.c.l.s4 1934713408
        %v864 = vunpack.c.0.s8 %v863
        %v865 = vperm.slane %v859, %v864
        %v867 = vunpack.c.l.s4 1934713408
        %v868 = vunpack.c.0.s8 %v867
        %v869 = vperm.slane %v861, %v868
        %v870 = vrot.slane %v865, 4
        %v871 = vsel %vm858, 0, %v870
        %v872 = vrot.slane %v869, 4
        %v873 = vsel %vm858, 0, %v872
        %v876 = vunpack.c.l.s4 1983009808
        %v877 = vunpack.c.0.s8 %v876
        %v878 = vperm.slane %v840, %v877
        %v881 = vunpack.c.l.s4 1983009808
        %v882 = vunpack.c.0.s8 %v881
        %v883 = vperm.slane %v846, %v882
        %v884 = vrot.slane %v883, 4
        %v885 = vsel %vm858, %v884, %v878
        %v886 = vrot.slane %v878, 4
        %v887 = vsel %vm858, %v883, %v886
        %v889 = vunpack.c.l.s4 1934713408
        %v890 = vunpack.c.0.s8 %v889
        %v891 = vperm.slane %v885, %v890
        %v893 = vunpack.c.l.s4 1934713408
        %v894 = vunpack.c.0.s8 %v893
        %v895 = vperm.slane %v887, %v894
        %v896 = vrot.slane %v891, 4
        %v897 = vsel %vm858, 0, %v896
        %v898 = vrot.slane %v895, 4
        %v899 = vsel %vm858, 0, %v898
        %v900 = vsel %vm858, %v872, %v865
        %v902 = vunpack.c.l.s4 1983009808
        %v903 = vunpack.c.0.s8 %v902
        %v904 = vperm.slane %v900, %v903
        %v905 = vrot.slane %v873, 4
        %v906 = vsel %vm858, %v905, %v871
        %v908 = vunpack.c.l.s4 1983009808
        %v909 = vunpack.c.0.s8 %v908
        %v910 = vperm.slane %v906, %v909
        %v911 = vrot.slane %v910, 4
        %v912 = vsel %vm858, %v911, %v904
        %v914 = vunpack.c.l.s4 1934713408
        %v915 = vunpack.c.0.s8 %v914
        %v916 = vperm.slane %v912, %v915
        %v917 = vrot.slane %v916, 4
        %v918 = vsel %vm858, 0, %v917
        %v919 = vsel %vm858, %v898, %v891
        %v921 = vunpack.c.l.s4 1983009808
        %v922 = vunpack.c.0.s8 %v921
        %v923 = vperm.slane %v919, %v922
        %v924 = vrot.slane %v899, 4
        %v925 = vsel %vm858, %v924, %v897
        %v927 = vunpack.c.l.s4 1983009808
        %v928 = vunpack.c.0.s8 %v927
        %v929 = vperm.slane %v925, %v928
        %v930 = vrot.slane %v929, 4
        %v931 = vsel %vm858, %v930, %v923
        %v933 = vunpack.c.l.s4 1934713408
        %v934 = vunpack.c.0.s8 %v933
        %v935 = vperm.slane %v931, %v934
        %v936 = vrot.slane %v935, 4
        %v937 = vsel %vm858, 0, %v936
        %v940 = vpack.i.b16 %v935, %v916
        %v941 = vshrl.u32 %v916, 16
        %v942 = vshrl.u32 %v935, 16
        %v943 = vpack.i.b16 %v942, %v941
        %v946 = vpack.i.b16 %v937, %v918
        %v947 = vshrl.u32 %v918, 16
        %v948 = vshrl.u32 %v937, 16
        %v949 = vpack.i.b16 %v948, %v947
        %950 = vrot.lane.b32.xlu0 %v826, 64
        %v951 = vpop.permute.xlu0 %950
        %952 = vrot.lane.b32.xlu0 %v830, 64
        %v953 = vpop.permute.xlu0 %952
        %954 = vrot.lane.b32.xlu0 %v832, 64
        %v955 = vpop.permute.xlu0 %954
        %956 = vrot.lane.b32.xlu0 %v834, 64
        %v957 = vpop.permute.xlu0 %956
        %v960 = vpack.i.b16 %v953, %v951
        %v961 = vshrl.u32 %v951, 16
        %v962 = vshrl.u32 %v953, 16
        %v963 = vpack.i.b16 %v962, %v961
        %v966 = vpack.i.b16 %v957, %v955
        %v967 = vshrl.u32 %v955, 16
        %v968 = vshrl.u32 %v957, 16
        %v969 = vpack.i.b16 %v968, %v967
        %v972 = vunpack.c.l.s4 1983009808
        %v973 = vunpack.c.0.s8 %v972
        %v974 = vperm.slane %v960, %v973
        %v977 = vunpack.c.l.s4 1983009808
        %v978 = vunpack.c.0.s8 %v977
        %v979 = vperm.slane %v966, %v978
        %v980 = vrot.slane %v979, 4
        %v981 = vsel %vm858, %v980, %v974
        %v982 = vrot.slane %v974, 4
        %v983 = vsel %vm858, %v979, %v982
        %v985 = vunpack.c.l.s4 1934713408
        %v986 = vunpack.c.0.s8 %v985
        %v987 = vperm.slane %v981, %v986
        %v989 = vunpack.c.l.s4 1934713408
        %v990 = vunpack.c.0.s8 %v989
        %v991 = vperm.slane %v983, %v990
        %v992 = vrot.slane %v987, 4
        %v993 = vsel %vm858, 0, %v992
        %v994 = vrot.slane %v991, 4
        %v995 = vsel %vm858, 0, %v994
        %v998 = vunpack.c.l.s4 1983009808
        %v999 = vunpack.c.0.s8 %v998
        %v1000 = vperm.slane %v963, %v999
        %v1003 = vunpack.c.l.s4 1983009808
        %v1004 = vunpack.c.0.s8 %v1003
        %v1005 = vperm.slane %v969, %v1004
        %v1006 = vrot.slane %v1005, 4
        %v1007 = vsel %vm858, %v1006, %v1000
        %v1008 = vrot.slane %v1000, 4
        %v1009 = vsel %vm858, %v1005, %v1008
        %v1011 = vunpack.c.l.s4 1934713408
        %v1012 = vunpack.c.0.s8 %v1011
        %v1013 = vperm.slane %v1007, %v1012
        %v1015 = vunpack.c.l.s4 1934713408
        %v1016 = vunpack.c.0.s8 %v1015
        %v1017 = vperm.slane %v1009, %v1016
        %v1018 = vrot.slane %v1013, 4
        %v1019 = vsel %vm858, 0, %v1018
        %v1020 = vrot.slane %v1017, 4
        %v1021 = vsel %vm858, 0, %v1020
        %v1022 = vsel %vm858, %v994, %v987
        %v1024 = vunpack.c.l.s4 1983009808
        %v1025 = vunpack.c.0.s8 %v1024
        %v1026 = vperm.slane %v1022, %v1025
        %v1027 = vrot.slane %v995, 4
        %v1028 = vsel %vm858, %v1027, %v993
        %v1030 = vunpack.c.l.s4 1983009808
        %v1031 = vunpack.c.0.s8 %v1030
        %v1032 = vperm.slane %v1028, %v1031
        %v1033 = vrot.slane %v1032, 4
        %v1034 = vsel %vm858, %v1033, %v1026
        %v1036 = vunpack.c.l.s4 1934713408
        %v1037 = vunpack.c.0.s8 %v1036
        %v1038 = vperm.slane %v1034, %v1037
        %v1039 = vrot.slane %v1038, 4
        %v1040 = vsel %vm858, 0, %v1039
        %v1041 = vsel %vm858, %v1020, %v1013
        %v1043 = vunpack.c.l.s4 1983009808
        %v1044 = vunpack.c.0.s8 %v1043
        %v1045 = vperm.slane %v1041, %v1044
        %v1046 = vrot.slane %v1021, 4
        %v1047 = vsel %vm858, %v1046, %v1019
        %v1049 = vunpack.c.l.s4 1983009808
        %v1050 = vunpack.c.0.s8 %v1049
        %v1051 = vperm.slane %v1047, %v1050
        %v1052 = vrot.slane %v1051, 4
        %v1053 = vsel %vm858, %v1052, %v1045
        %v1055 = vunpack.c.l.s4 1934713408
        %v1056 = vunpack.c.0.s8 %v1055
        %v1057 = vperm.slane %v1053, %v1056
        %v1058 = vrot.slane %v1057, 4
        %v1059 = vsel %vm858, 0, %v1058
        %v1062 = vpack.i.b16 %v1057, %v1038
        %v1063 = vshrl.u32 %v1038, 16
        %v1064 = vshrl.u32 %v1057, 16
        %v1065 = vpack.i.b16 %v1064, %v1063
        %v1068 = vpack.i.b16 %v1059, %v1040
        %v1069 = vshrl.u32 %v1040, 16
        %v1070 = vshrl.u32 %v1059, 16
        %v1071 = vpack.i.b16 %v1070, %v1069
        %1073 = vrot.lane.b32.xlu0 %v827, 112
        %v1074 = vpop.permute.xlu0 %1073
        %1075 = vrot.lane.b32.xlu0 %v827, 96
        %v1076 = vpop.permute.xlu0 %1075
        %1077 = vrot.lane.b32.xlu0 %v827, 80
        %v1078 = vpop.permute.xlu0 %1077
        %v1081 = vpack.i.b16 %v1074, %v827
        %v1082 = vshrl.u32 %v827, 16
        %v1083 = vshrl.u32 %v1074, 16
        %v1084 = vpack.i.b16 %v1083, %v1082
        %v1087 = vpack.i.b16 %v1078, %v1076
        %v1088 = vshrl.u32 %v1076, 16
        %v1089 = vshrl.u32 %v1078, 16
        %v1090 = vpack.i.b16 %v1089, %v1088
        %v1093 = vunpack.c.l.s4 1983009808
        %v1094 = vunpack.c.0.s8 %v1093
        %v1095 = vperm.slane %v1081, %v1094
        %v1098 = vunpack.c.l.s4 1983009808
        %v1099 = vunpack.c.0.s8 %v1098
        %v1100 = vperm.slane %v1087, %v1099
        %v1101 = vrot.slane %v1100, 4
        %v1102 = vsel %vm858, %v1101, %v1095
        %v1103 = vrot.slane %v1095, 4
        %v1104 = vsel %vm858, %v1100, %v1103
        %v1106 = vunpack.c.l.s4 1934713408
        %v1107 = vunpack.c.0.s8 %v1106
        %v1108 = vperm.slane %v1102, %v1107
        %v1110 = vunpack.c.l.s4 1934713408
        %v1111 = vunpack.c.0.s8 %v1110
        %v1112 = vperm.slane %v1104, %v1111
        %v1113 = vrot.slane %v1108, 4
        %v1114 = vsel %vm858, 0, %v1113
        %v1115 = vrot.slane %v1112, 4
        %v1116 = vsel %vm858, 0, %v1115
        %v1119 = vunpack.c.l.s4 1983009808
        %v1120 = vunpack.c.0.s8 %v1119
        %v1121 = vperm.slane %v1084, %v1120
        %v1124 = vunpack.c.l.s4 1983009808
        %v1125 = vunpack.c.0.s8 %v1124
        %v1126 = vperm.slane %v1090, %v1125
        %v1127 = vrot.slane %v1126, 4
        %v1128 = vsel %vm858, %v1127, %v1121
        %v1129 = vrot.slane %v1121, 4
        %v1130 = vsel %vm858, %v1126, %v1129
        %v1132 = vunpack.c.l.s4 1934713408
        %v1133 = vunpack.c.0.s8 %v1132
        %v1134 = vperm.slane %v1128, %v1133
        %v1136 = vunpack.c.l.s4 1934713408
        %v1137 = vunpack.c.0.s8 %v1136
        %v1138 = vperm.slane %v1130, %v1137
        %v1139 = vrot.slane %v1134, 4
        %v1140 = vsel %vm858, 0, %v1139
        %v1141 = vrot.slane %v1138, 4
        %v1142 = vsel %vm858, 0, %v1141
        %v1143 = vsel %vm858, %v1115, %v1108
        %v1145 = vunpack.c.l.s4 1983009808
        %v1146 = vunpack.c.0.s8 %v1145
        %v1147 = vperm.slane %v1143, %v1146
        %v1148 = vrot.slane %v1116, 4
        %v1149 = vsel %vm858, %v1148, %v1114
        %v1151 = vunpack.c.l.s4 1983009808
        %v1152 = vunpack.c.0.s8 %v1151
        %v1153 = vperm.slane %v1149, %v1152
        %v1154 = vrot.slane %v1153, 4
        %v1155 = vsel %vm858, %v1154, %v1147
        %v1157 = vunpack.c.l.s4 1934713408
        %v1158 = vunpack.c.0.s8 %v1157
        %v1159 = vperm.slane %v1155, %v1158
        %v1160 = vrot.slane %v1159, 4
        %v1161 = vsel %vm858, 0, %v1160
        %v1162 = vsel %vm858, %v1141, %v1134
        %v1164 = vunpack.c.l.s4 1983009808
        %v1165 = vunpack.c.0.s8 %v1164
        %v1166 = vperm.slane %v1162, %v1165
        %v1167 = vrot.slane %v1142, 4
        %v1168 = vsel %vm858, %v1167, %v1140
        %v1170 = vunpack.c.l.s4 1983009808
        %v1171 = vunpack.c.0.s8 %v1170
        %v1172 = vperm.slane %v1168, %v1171
        %v1173 = vrot.slane %v1172, 4
        %v1174 = vsel %vm858, %v1173, %v1166
        %v1176 = vunpack.c.l.s4 1934713408
        %v1177 = vunpack.c.0.s8 %v1176
        %v1178 = vperm.slane %v1174, %v1177
        %v1179 = vrot.slane %v1178, 4
        %v1180 = vsel %vm858, 0, %v1179
        %v1183 = vpack.i.b16 %v1178, %v1159
        %v1184 = vshrl.u32 %v1159, 16
        %v1185 = vshrl.u32 %v1178, 16
        %v1186 = vpack.i.b16 %v1185, %v1184
        %v1189 = vpack.i.b16 %v1180, %v1161
        %v1190 = vshrl.u32 %v1161, 16
        %v1191 = vshrl.u32 %v1180, 16
        %v1192 = vpack.i.b16 %v1191, %v1190
        %vm1193 = vcmask 130048
        %v1195 = vsel %vm1193, %v940, 0
        %v1198 = vsel %vm1193, %v1062, 0
        %1200 = vmatpush.bf16.xpose.msra.mxu0 0
        %1201 = vmatpush.bf16.xpose.msra.mxu0 0
        %1202 = vmatpush.bf16.xpose.msra.mxu0 0
        %1203 = vmatpush.bf16.xpose.msra.mxu0 0
        %1204 = vmatpush.bf16.xpose.msra.mxu0 0
        %1205 = vmatpush.bf16.xpose.msra.mxu0 0
        %1206 = vmatpush.bf16.xpose.msra.mxu0 0
        %1207 = vmatpush.bf16.xpose.msra.mxu0 %v1198
        %1208 = vmatmul.bf16.gmra.mxu0 %v1195
        %v1209 = vpop.f32.mrf.mxu0
        %v1210 = vadd.f32 0.0, %v1209
        %v1211 = vpop.f32.mrf.mxu0
        %1212 = vdwg.mxu0
        %v1214 = vsel %vm1193, %v943, 0
        %v1217 = vsel %vm1193, %v1065, 0
        %1219 = vmatpush.bf16.xpose.msra.mxu0 0
        %1220 = vmatpush.bf16.xpose.msra.mxu0 0
        %1221 = vmatpush.bf16.xpose.msra.mxu0 0
        %1222 = vmatpush.bf16.xpose.msra.mxu0 0
        %1223 = vmatpush.bf16.xpose.msra.mxu0 0
        %1224 = vmatpush.bf16.xpose.msra.mxu0 0
        %1225 = vmatpush.bf16.xpose.msra.mxu0 0
        %1226 = vmatpush.bf16.xpose.msra.mxu0 %v1217
        %1227 = vmatmul.bf16.gmra.mxu0 %v1214
        %v1228 = vpop.f32.mrf.mxu0
        %v1229 = vadd.f32 0.0, %v1228
        %v1230 = vpop.f32.mrf.mxu0
        %1231 = vdwg.mxu0
        %v1233 = vsel %vm1193, %v946, 0
        %v1236 = vsel %vm1193, %v1068, 0
        %1238 = vmatpush.bf16.xpose.msra.mxu0 0
        %1239 = vmatpush.bf16.xpose.msra.mxu0 0
        %1240 = vmatpush.bf16.xpose.msra.mxu0 0
        %1241 = vmatpush.bf16.xpose.msra.mxu0 0
        %1242 = vmatpush.bf16.xpose.msra.mxu0 0
        %1243 = vmatpush.bf16.xpose.msra.mxu0 0
        %1244 = vmatpush.bf16.xpose.msra.mxu0 0
        %1245 = vmatpush.bf16.xpose.msra.mxu0 %v1236
        %1246 = vmatmul.bf16.gmra.mxu0 %v1233
        %v1247 = vpop.f32.mrf.mxu0
        %v1248 = vadd.f32 0.0, %v1247
        %v1249 = vpop.f32.mrf.mxu0
        %1250 = vdwg.mxu0
        %v1252 = vsel %vm1193, %v949, 0
        %v1255 = vsel %vm1193, %v1071, 0
        %1257 = vmatpush.bf16.xpose.msra.mxu0 0
        %1258 = vmatpush.bf16.xpose.msra.mxu0 0
        %1259 = vmatpush.bf16.xpose.msra.mxu0 0
        %1260 = vmatpush.bf16.xpose.msra.mxu0 0
        %1261 = vmatpush.bf16.xpose.msra.mxu0 0
        %1262 = vmatpush.bf16.xpose.msra.mxu0 0
        %1263 = vmatpush.bf16.xpose.msra.mxu0 0
        %1264 = vmatpush.bf16.xpose.msra.mxu0 %v1255
        %1265 = vmatmul.bf16.gmra.mxu0 %v1252
        %v1266 = vpop.f32.mrf.mxu0
        %v1267 = vadd.f32 0.0, %v1266
        %v1268 = vpop.f32.mrf.mxu0
        %1269 = vdwg.mxu0
        %v1270 = vlaneseq
        %v1271 = vshrl.u32 %v1270, 7
        %v1272 = vlaneseq
        %v1273 = vand.u32 %v1272, 127
        %vm1274 = vcmp.ge.s32.totalorder %v1271, %v1273
        %v1275 = vsel %vm1274, 1, 0
        %vm1276 = vcmp.eq.s32.totalorder %v1275, 1
        %v1277 = vsel %vm1276, %v1210, -1e+30
        %v1278 = vsel %vm1276, %v1229, -1e+30
        %v1279 = vsel %vm1276, %v1248, -1e+30
        %v1280 = vsel %vm1276, %v1267, -1e+30
        %vm1281 = vcmask 64512
        %v1282 = vsel %vm1281, %v1277, -inf
        %1283 = vmax.xlane.f32.xlu0 %v1282
        %v1284 = vpop.xlane.xlu0 %1283
        %v1285 = vsel %vm1281, %v1278, -inf
        %1286 = vmax.xlane.f32.xlu0 %v1285
        %v1287 = vpop.xlane.xlu0 %1286
        %v1288 = vsel %vm1281, %v1279, -inf
        %1289 = vmax.xlane.f32.xlu0 %v1288
        %v1290 = vpop.xlane.xlu0 %1289
        %v1291 = vsel %vm1281, %v1280, -inf
        %1292 = vmax.xlane.f32.xlu0 %v1291
        %v1293 = vpop.xlane.xlu0 %1292
        %v1294 = vsub.f32 %v1277, %v1284
        %v1295 = vsub.f32 %v1278, %v1287
        %v1296 = vsub.f32 %v1279, %v1290
        %v1297 = vsub.f32 %v1280, %v1293
        %v1298 = vmul.f32 %v1294, 1.442695
        %v1299 = vpow.pop %v1298
        %v1300 = vmul.f32 %v1295, 1.442695
        %v1301 = vpow.pop %v1300
        %v1302 = vmul.f32 %v1296, 1.442695
        %v1303 = vpow.pop %v1302
        %v1304 = vmul.f32 %v1297, 1.442695
        %v1305 = vpow.pop %v1304
        %v1306 = vsel %vm1281, %v1299, 0.0
        %1307 = vadd.xlane.f32.xlu0 %v1306
        %v1308 = vpop.xlane.xlu0 %1307
        %v1309 = vsel %vm1281, %v1301, 0.0
        %1310 = vadd.xlane.f32.xlu0 %v1309
        %v1311 = vpop.xlane.xlu0 %1310
        %v1312 = vsel %vm1281, %v1303, 0.0
        %1313 = vadd.xlane.f32.xlu0 %v1312
        %v1314 = vpop.xlane.xlu0 %1313
        %v1315 = vsel %vm1281, %v1305, 0.0
        %1316 = vadd.xlane.f32.xlu0 %v1315
        %v1317 = vpop.xlane.xlu0 %1316
        %v1318 = vrcp.pop %v1308
        %v1319 = vrcp.pop %v1311
        %v1320 = vrcp.pop %v1314
        %v1321 = vrcp.pop %v1317
        %v1322 = vmul.f32 %v1299, %v1318
        %v1323 = vmul.f32 %v1301, %v1319
        %v1324 = vmul.f32 %v1303, %v1320
        %v1325 = vmul.f32 %v1305, %v1321
        %v1326 = vpack.c.bf16 %v1322, %v1322
        %v1327 = vpack.c.bf16 %v1323, %v1323
        %v1328 = vpack.c.bf16 %v1324, %v1324
        %v1329 = vpack.c.bf16 %v1325, %v1325
        %v1331 = vsel %vm1281, %v1326, 0
        %vm1333 = vcmask 1043456
        %v1335 = vsel %vm1333, %v1183, 0
        %1337 = vmatpush.bf16.msra.mxu0 0
        %1338 = vmatpush.bf16.msra.mxu0 0
        %1339 = vmatpush.bf16.msra.mxu0 0
        %1340 = vmatpush.bf16.msra.mxu0 0
        %1341 = vmatpush.bf16.msra.mxu0 0
        %1342 = vmatpush.bf16.msra.mxu0 0
        %1343 = vmatpush.bf16.msra.mxu0 0
        %1344 = vmatpush.bf16.msra.mxu0 %v1335
        %1345 = vmatmul.bf16.gmra.mxu0 %v1331
        %v1346 = vpop.f32.mrf.mxu0
        %v1347 = vadd.f32 0.0, %v1346
        %v1348 = vpop.f32.mrf.mxu0
        %1349 = vdwg.mxu0
        %v1351 = vsel %vm1281, %v1327, 0
        %v1354 = vsel %vm1333, %v1186, 0
        %1356 = vmatpush.bf16.msra.mxu0 0
        %1357 = vmatpush.bf16.msra.mxu0 0
        %1358 = vmatpush.bf16.msra.mxu0 0
        %1359 = vmatpush.bf16.msra.mxu0 0
        %1360 = vmatpush.bf16.msra.mxu0 0
        %1361 = vmatpush.bf16.msra.mxu0 0
        %1362 = vmatpush.bf16.msra.mxu0 0
        %1363 = vmatpush.bf16.msra.mxu0 %v1354
        %1364 = vmatmul.bf16.gmra.mxu0 %v1351
        %v1365 = vpop.f32.mrf.mxu0
        %v1366 = vadd.f32 0.0, %v1365
        %v1367 = vpop.f32.mrf.mxu0
        %1368 = vdwg.mxu0
        %v1370 = vsel %vm1281, %v1328, 0
        %v1373 = vsel %vm1333, %v1189, 0
        %1375 = vmatpush.bf16.msra.mxu0 0
        %1376 = vmatpush.bf16.msra.mxu0 0
        %1377 = vmatpush.bf16.msra.mxu0 0
        %1378 = vmatpush.bf16.msra.mxu0 0
        %1379 = vmatpush.bf16.msra.mxu0 0
        %1380 = vmatpush.bf16.msra.mxu0 0
        %1381 = vmatpush.bf16.msra.mxu0 0
        %1382 = vmatpush.bf16.msra.mxu0 %v1373
        %1383 = vmatmul.bf16.gmra.mxu0 %v1370
        %v1384 = vpop.f32.mrf.mxu0
        %v1385 = vadd.f32 0.0, %v1384
        %v1386 = vpop.f32.mrf.mxu0
        %1387 = vdwg.mxu0
        %v1389 = vsel %vm1281, %v1329, 0
        %v1392 = vsel %vm1333, %v1192, 0
        %1394 = vmatpush.bf16.msra.mxu0 0
        %1395 = vmatpush.bf16.msra.mxu0 0
        %1396 = vmatpush.bf16.msra.mxu0 0
        %1397 = vmatpush.bf16.msra.mxu0 0
        %1398 = vmatpush.bf16.msra.mxu0 0
        %1399 = vmatpush.bf16.msra.mxu0 0
        %1400 = vmatpush.bf16.msra.mxu0 0
        %1401 = vmatpush.bf16.msra.mxu0 %v1392
        %1402 = vmatmul.bf16.gmra.mxu0 %v1389
        %v1403 = vpop.f32.mrf.mxu0
        %v1404 = vadd.f32 0.0, %v1403
        %v1405 = vpop.f32.mrf.mxu0
        %1406 = vdwg.mxu0
        %v1407 = vpack.c.bf16 %v1347, %v1347
        %v1408 = vpack.c.bf16 %v1366, %v1366
        %v1409 = vpack.c.bf16 %v1385, %v1385
        %v1410 = vpack.c.bf16 %v1404, %v1404
        %v1411 = vld [vmem:[%s630] sm:$0xf]
        %v1412 = vld [vmem:[%s630 + $0x4] sm:$0xf]
        %v1413 = vld [vmem:[%s630 + $0x8] sm:$0xf]
        %v1414 = vld [vmem:[%s630 + $0xc] sm:$0xf]
        %v1415 = vld [vmem:[%s630 + $0x10] sm:$0xf]
        %v1416 = vld [vmem:[%s630 + $0x14] sm:$0xf]
        %v1417 = vld [vmem:[%s630 + $0x18] sm:$0xf]
        %v1418 = vld [vmem:[%s630 + $0x1c] sm:$0xf]
        %v1421 = vunpack.c.l.b16 %v1411
        %v1422 = vunpack.c.l.b16 %v1412
        %v1423 = vpack.c.b16 %v1422, %v1421
        %v1426 = vsel %vm1193, %v1407, 0
        %1428 = vmatpush.bf16.msra.mxu0 0
        %1429 = vmatpush.bf16.msra.mxu0 0
        %1430 = vmatpush.bf16.msra.mxu0 0
        %1431 = vmatpush.bf16.msra.mxu0 0
        %1432 = vmatpush.bf16.msra.mxu0 0
        %1433 = vmatpush.bf16.msra.mxu0 0
        %1434 = vmatpush.bf16.msra.mxu0 0
        %1435 = vmatpush.bf16.msra.mxu0 %v1423
        %1436 = vmatmul.bf16.gmra.mxu0 %v1426
        %v1437 = vpop.f32.mrf.mxu0
        %v1438 = vadd.f32 0.0, %v1437
        %v1439 = vpop.f32.mrf.mxu0
        %1440 = vdwg.mxu0
        %v1443 = vunpack.c.l.b16 %v1413
        %v1444 = vunpack.c.l.b16 %v1414
        %v1445 = vpack.c.b16 %v1444, %v1443
        %v1448 = vsel %vm1193, %v1408, 0
        %1450 = vmatpush.bf16.msra.mxu0 0
        %1451 = vmatpush.bf16.msra.mxu0 0
        %1452 = vmatpush.bf16.msra.mxu0 0
        %1453 = vmatpush.bf16.msra.mxu0 0
        %1454 = vmatpush.bf16.msra.mxu0 0
        %1455 = vmatpush.bf16.msra.mxu0 0
        %1456 = vmatpush.bf16.msra.mxu0 0
        %1457 = vmatpush.bf16.msra.mxu0 %v1445
        %1458 = vmatmul.bf16.gmra.mxu0 %v1448
        %v1459 = vpop.f32.mrf.mxu0
        %v1460 = vadd.f32 0.0, %v1459
        %v1461 = vpop.f32.mrf.mxu0
        %1462 = vdwg.mxu0
        %v1465 = vunpack.c.l.b16 %v1415
        %v1466 = vunpack.c.l.b16 %v1416
        %v1467 = vpack.c.b16 %v1466, %v1465
        %v1470 = vsel %vm1193, %v1409, 0
        %1472 = vmatpush.bf16.msra.mxu0 0
        %1473 = vmatpush.bf16.msra.mxu0 0
        %1474 = vmatpush.bf16.msra.mxu0 0
        %1475 = vmatpush.bf16.msra.mxu0 0
        %1476 = vmatpush.bf16.msra.mxu0 0
        %1477 = vmatpush.bf16.msra.mxu0 0
        %1478 = vmatpush.bf16.msra.mxu0 0
        %1479 = vmatpush.bf16.msra.mxu0 %v1467
        %1480 = vmatmul.bf16.gmra.mxu0 %v1470
        %v1481 = vpop.f32.mrf.mxu0
        %v1482 = vadd.f32 0.0, %v1481
        %v1483 = vpop.f32.mrf.mxu0
        %1484 = vdwg.mxu0
        %v1487 = vunpack.c.l.b16 %v1417
        %v1488 = vunpack.c.l.b16 %v1418
        %v1489 = vpack.c.b16 %v1488, %v1487
        %v1492 = vsel %vm1193, %v1410, 0
        %1494 = vmatpush.bf16.msra.mxu0 0
        %1495 = vmatpush.bf16.msra.mxu0 0
        %1496 = vmatpush.bf16.msra.mxu0 0
        %1497 = vmatpush.bf16.msra.mxu0 0
        %1498 = vmatpush.bf16.msra.mxu0 0
        %1499 = vmatpush.bf16.msra.mxu0 0
        %1500 = vmatpush.bf16.msra.mxu0 0
        %1501 = vmatpush.bf16.msra.mxu0 %v1489
        %1502 = vmatmul.bf16.gmra.mxu0 %v1492
        %v1503 = vpop.f32.mrf.mxu0
        %v1504 = vadd.f32 0.0, %v1503
        %v1505 = vpop.f32.mrf.mxu0
        %1506 = vdwg.mxu0
        %v1507 = vsel %vm704, %v1438, 0.0
        %v1508 = vsel %vm704, %v1460, 0.0
        %v1509 = vadd.f32 %v1507, %v1508
        %v1510 = vsel %vm704, %v1482, 0.0
        %v1511 = vadd.f32 %v1509, %v1510
        %v1512 = vsel %vm704, %v1504, 0.0
        %v1513 = vadd.f32 %v1511, %v1512
        %v1514 = vld [vmem:[%s633] sm:$0x1]
        %v1516 = vperm.slane %v1514, 0
        %v1518 = vadd.f32 %v1513, %v1516
        %v1519 = vadd.f32 %v701, %v1518
        %v1520 = vld [vmem:[%s636] sm:$0x1]
        %v1521 = vld [vmem:[%s639] sm:$0x1]
        %v1522 = vsel %vm704, %v1519, 0.0
        %1523 = vadd.xlane.f32.xlu0 %v1522
        %v1524 = vpop.xlane.xlu0 %1523
        %v1525 = vmul.f32 %v1524, %v714
        %v1526 = vsub.f32 %v1519, %v1525
        %v1527 = vmul.f32 %v1526, %v1526
        %v1528 = vsel %vm704, %v1527, 0.0
        %1529 = vadd.xlane.f32.xlu0 %v1528
        %v1530 = vpop.xlane.xlu0 %1529
        %v1531 = vmul.f32 %v1530, %v714
        %v1532 = vadd.f32 %v1531, 1e-05
        %v1533 = vrsqrt.pop %v1532
        %v1534 = vmul.f32 %v1533, %v1532
        %v1535 = vmul.f32 %v1534, %v1533
        %v1536 = vmul.f32 0.5, %v1535
        %v1537 = vsub.f32 1.5, %v1536
        %v1538 = vmul.f32 %v1533, %v1537
        %vm1539 = vweird.f32 %v1532
        %vm1540 = vweird.f32 %v1533
        %vm1541 = vmor %vm1539, %vm1540
        %v1542 = vsel %vm1541, %v1533, %v1538
        %v1543 = vmul.f32 %v1526, %v1542
        %v1545 = vperm.slane %v1520, 0
        %v1547 = vmul.f32 %v1543, %v1545
        %v1549 = vperm.slane %v1521, 0
        %v1551 = vadd.f32 %v1547, %v1549
        %v1552 = vpack.c.bf16 %v1551, %v1551
        %v1553 = vld [vmem:[%s644] sm:$0xff]
        %v1554 = vld [vmem:[%s644 + $0x8] sm:$0xff]
        %v1555 = vld [vmem:[%s644 + $0x10] sm:$0xff]
        %v1556 = vld [vmem:[%s644 + $0x18] sm:$0xff]
        %v1557 = vld [vmem:[%s644 + $0x20] sm:$0xff]
        %v1558 = vld [vmem:[%s644 + $0x28] sm:$0xff]
        %v1559 = vld [vmem:[%s644 + $0x30] sm:$0xff]
        %v1560 = vld [vmem:[%s644 + $0x38] sm:$0xff]
        %v1561 = vld [vmem:[%s648] sm:$0x3]
        %v1563 = vperm.slane %v1561, 0
        %v1564 = vperm.slane %v1561, 1
        %v1575 = vunpack.c.l.b16 %v1553
        %v1576 = vunpack.c.h.b16 %v1553
        %v1577 = vunpack.c.l.b16 %v1554
        %v1578 = vunpack.c.h.b16 %v1554
        %v1579 = vunpack.c.l.b16 %v1555
        %v1580 = vunpack.c.h.b16 %v1555
        %v1581 = vunpack.c.l.b16 %v1556
        %v1582 = vunpack.c.h.b16 %v1556
        %v1583 = vunpack.c.l.b16 %v1557
        %v1584 = vunpack.c.h.b16 %v1557
        %v1585 = vunpack.c.l.b16 %v1558
        %v1586 = vunpack.c.h.b16 %v1558
        %v1587 = vunpack.c.l.b16 %v1559
        %v1588 = vunpack.c.h.b16 %v1559
        %v1589 = vunpack.c.l.b16 %v1560
        %v1590 = vunpack.c.h.b16 %v1560
        %v1591 = vpack.c.b16 %v1577, %v1575
        %v1592 = vpack.c.b16 %v1578, %v1576
        %v1593 = vpack.c.b16 %v1581, %v1579
        %v1594 = vpack.c.b16 %v1582, %v1580
        %v1595 = vpack.c.b16 %v1585, %v1583
        %v1596 = vpack.c.b16 %v1586, %v1584
        %v1597 = vpack.c.b16 %v1589, %v1587
        %v1598 = vpack.c.b16 %v1590, %v1588
        %v1608 = vsel %vm704, %v1552, 0
        %1610 = vmatpush.bf16.msra.mxu0 0
        %1611 = vmatpush.bf16.msra.mxu0 0
        %1612 = vmatpush.bf16.msra.mxu0 0
        %1613 = vmatpush.bf16.msra.mxu0 0
        %1614 = vmatpush.bf16.msra.mxu0 %v1597
        %1615 = vmatpush.bf16.msra.mxu0 %v1595
        %1616 = vmatpush.bf16.msra.mxu0 %v1593
        %1617 = vmatpush.bf16.msra.mxu0 %v1591
        %1618 = vmatmul.bf16.gmra.mxu0 %v1608
        %v1619 = vpop.f32.mrf.mxu0
        %v1620 = vadd.f32 %v1563, %v1619
        %v1621 = vpop.f32.mrf.mxu0
        %1622 = vdwg.mxu0
        %1623 = vmatpush.bf16.msra.mxu0 0
        %1624 = vmatpush.bf16.msra.mxu0 0
        %1625 = vmatpush.bf16.msra.mxu0 0
        %1626 = vmatpush.bf16.msra.mxu0 0
        %1627 = vmatpush.bf16.msra.mxu0 %v1598
        %1628 = vmatpush.bf16.msra.mxu0 %v1596
        %1629 = vmatpush.bf16.msra.mxu0 %v1594
        %1630 = vmatpush.bf16.msra.mxu0 %v1592
        %1631 = vmatmul.bf16.gmra.mxu0 %v1608
        %v1632 = vpop.f32.mrf.mxu0
        %v1633 = vadd.f32 %v1564, %v1632
        %v1634 = vpop.f32.mrf.mxu0
        %1635 = vdwg.mxu0
        %v1636 = vmul.f32 %v1620, %v1620
        %v1637 = vmul.f32 %v1633, %v1633
        %v1638 = vmul.f32 %v1620, %v1636
        %v1639 = vmul.f32 %v1633, %v1637
        %v1640 = vmul.f32 %v1638, 0.044715
        %v1641 = vmul.f32 %v1639, 0.044715
        %v1642 = vadd.f32 %v1620, %v1640
        %v1643 = vadd.f32 %v1633, %v1641
        %v1644 = vmul.f32 %v1642, 0.7978846
        %v1645 = vmul.f32 %v1643, 0.7978846
        %v1646 = vtanh.pop %v1644
        %v1647 = vtanh.pop %v1645
        %v1648 = vadd.f32 %v1646, 1.0
        %v1649 = vadd.f32 %v1647, 1.0
        %v1650 = vmul.f32 %v1648, 0.5
        %v1651 = vmul.f32 %v1649, 0.5
        %v1652 = vmul.f32 %v1620, %v1650
        %v1653 = vmul.f32 %v1633, %v1651
        %v1654 = vpack.c.bf16 %v1652, %v1652
        %v1655 = vpack.c.bf16 %v1653, %v1653
        %v1656 = vld [vmem:[%s653] sm:$0xf]
        %v1657 = vld [vmem:[%s653 + $0x4] sm:$0xf]
        %v1658 = vld [vmem:[%s653 + $0x8] sm:$0xf]
        %v1659 = vld [vmem:[%s653 + $0xc] sm:$0xf]
        %v1660 = vld [vmem:[%s653 + $0x10] sm:$0xf]
        %v1661 = vld [vmem:[%s653 + $0x14] sm:$0xf]
        %v1662 = vld [vmem:[%s653 + $0x18] sm:$0xf]
        %v1663 = vld [vmem:[%s653 + $0x1c] sm:$0xf]
        %v1664 = vld [vmem:[%s653 + $0x20] sm:$0xf]
        %v1665 = vld [vmem:[%s653 + $0x24] sm:$0xf]
        %v1666 = vld [vmem:[%s653 + $0x28] sm:$0xf]
        %v1667 = vld [vmem:[%s653 + $0x2c] sm:$0xf]
        %v1668 = vld [vmem:[%s653 + $0x30] sm:$0xf]
        %v1669 = vld [vmem:[%s653 + $0x34] sm:$0xf]
        %v1670 = vld [vmem:[%s653 + $0x38] sm:$0xf]
        %v1671 = vld [vmem:[%s653 + $0x3c] sm:$0xf]
        %v1672 = vld [vmem:[%s653 + $0x40] sm:$0xf]
        %v1673 = vld [vmem:[%s653 + $0x44] sm:$0xf]
        %v1674 = vld [vmem:[%s653 + $0x48] sm:$0xf]
        %v1675 = vld [vmem:[%s653 + $0x4c] sm:$0xf]
        %v1676 = vld [vmem:[%s653 + $0x50] sm:$0xf]
        %v1677 = vld [vmem:[%s653 + $0x54] sm:$0xf]
        %v1678 = vld [vmem:[%s653 + $0x58] sm:$0xf]
        %v1679 = vld [vmem:[%s653 + $0x5c] sm:$0xf]
        %v1680 = vld [vmem:[%s653 + $0x60] sm:$0xf]
        %v1681 = vld [vmem:[%s653 + $0x64] sm:$0xf]
        %v1682 = vld [vmem:[%s653 + $0x68] sm:$0xf]
        %v1683 = vld [vmem:[%s653 + $0x6c] sm:$0xf]
        %v1684 = vld [vmem:[%s653 + $0x70] sm:$0xf]
        %v1685 = vld [vmem:[%s653 + $0x74] sm:$0xf]
        %v1686 = vld [vmem:[%s653 + $0x78] sm:$0xf]
        %v1687 = vld [vmem:[%s653 + $0x7c] sm:$0xf]
        %v1688 = vld [vmem:[%s656] sm:$0x1]
        %v1690 = vperm.slane %v1688, 0
        %v1724 = vunpack.c.l.b16 %v1656
        %v1725 = vunpack.c.l.b16 %v1657
        %v1726 = vunpack.c.l.b16 %v1658
        %v1727 = vunpack.c.l.b16 %v1659
        %v1728 = vunpack.c.l.b16 %v1660
        %v1729 = vunpack.c.l.b16 %v1661
        %v1730 = vunpack.c.l.b16 %v1662
        %v1731 = vunpack.c.l.b16 %v1663
        %v1732 = vunpack.c.l.b16 %v1664
        %v1733 = vunpack.c.l.b16 %v1665
        %v1734 = vunpack.c.l.b16 %v1666
        %v1735 = vunpack.c.l.b16 %v1667
        %v1736 = vunpack.c.l.b16 %v1668
        %v1737 = vunpack.c.l.b16 %v1669
        %v1738 = vunpack.c.l.b16 %v1670
        %v1739 = vunpack.c.l.b16 %v1671
        %v1740 = vunpack.c.l.b16 %v1672
        %v1741 = vunpack.c.l.b16 %v1673
        %v1742 = vunpack.c.l.b16 %v1674
        %v1743 = vunpack.c.l.b16 %v1675
        %v1744 = vunpack.c.l.b16 %v1676
        %v1745 = vunpack.c.l.b16 %v1677
        %v1746 = vunpack.c.l.b16 %v1678
        %v1747 = vunpack.c.l.b16 %v1679
        %v1748 = vunpack.c.l.b16 %v1680
        %v1749 = vunpack.c.l.b16 %v1681
        %v1750 = vunpack.c.l.b16 %v1682
        %v1751 = vunpack.c.l.b16 %v1683
        %v1752 = vunpack.c.l.b16 %v1684
        %v1753 = vunpack.c.l.b16 %v1685
        %v1754 = vunpack.c.l.b16 %v1686
        %v1755 = vunpack.c.l.b16 %v1687
        %v1756 = vpack.c.b16 %v1725, %v1724
        %v1757 = vpack.c.b16 %v1727, %v1726
        %v1758 = vpack.c.b16 %v1729, %v1728
        %v1759 = vpack.c.b16 %v1731, %v1730
        %v1760 = vpack.c.b16 %v1733, %v1732
        %v1761 = vpack.c.b16 %v1735, %v1734
        %v1762 = vpack.c.b16 %v1737, %v1736
        %v1763 = vpack.c.b16 %v1739, %v1738
        %v1764 = vpack.c.b16 %v1741, %v1740
        %v1765 = vpack.c.b16 %v1743, %v1742
        %v1766 = vpack.c.b16 %v1745, %v1744
        %v1767 = vpack.c.b16 %v1747, %v1746
        %v1768 = vpack.c.b16 %v1749, %v1748
        %v1769 = vpack.c.b16 %v1751, %v1750
        %v1770 = vpack.c.b16 %v1753, %v1752
        %v1771 = vpack.c.b16 %v1755, %v1754
        %1788 = vmatpush.bf16.msra.mxu0 %v1763
        %1789 = vmatpush.bf16.msra.mxu0 %v1762
        %1790 = vmatpush.bf16.msra.mxu0 %v1761
        %1791 = vmatpush.bf16.msra.mxu0 %v1760
        %1792 = vmatpush.bf16.msra.mxu0 %v1759
        %1793 = vmatpush.bf16.msra.mxu0 %v1758
        %1794 = vmatpush.bf16.msra.mxu0 %v1757
        %1795 = vmatpush.bf16.msra.mxu0 %v1756
        %1796 = vmatmul.bf16.gmra.mxu0 %v1654
        %v1797 = vpop.f32.mrf.mxu0
        %v1798 = vadd.f32 %v1690, %v1797
        %v1799 = vpop.f32.mrf.mxu0
        %1800 = vdwg.mxu0
        %1801 = vmatpush.bf16.msra.mxu0 %v1771
        %1802 = vmatpush.bf16.msra.mxu0 %v1770
        %1803 = vmatpush.bf16.msra.mxu0 %v1769
        %1804 = vmatpush.bf16.msra.mxu0 %v1768
        %1805 = vmatpush.bf16.msra.mxu0 %v1767
        %1806 = vmatpush.bf16.msra.mxu0 %v1766
        %1807 = vmatpush.bf16.msra.mxu0 %v1765
        %1808 = vmatpush.bf16.msra.mxu0 %v1764
        %1809 = vmatmul.bf16.gmra.mxu0 %v1655
        %v1810 = vpop.f32.mrf.mxu0
        %v1811 = vadd.f32 %v1798, %v1810
        %v1812 = vpop.f32.mrf.mxu0
        %1813 = vdwg.mxu0
        %v1814 = vadd.f32 %v1519, %v1811
        %1815 = vst.msk [vmem:[#allocation2] sm:$0xff] %vm704, %v1814
        %p1816 = scmp.eq.s32.totalorder %s34, 1
        // Predicated region
        $region115: #{tpu_custom_call.1} parent=75 // pred_check
          %p1817 = pneg %p1816
        $region116: #{tpu_custom_call.1} parent=75 // pred_check_branch
          %1819 = sbr.rel (%p1817) target = $region118
        $region117: #{tpu_custom_call.1} parent=75 // pred_region
          %v1820 = vld [vmem:[%s13] sm:$0x1]
          %v1821 = vld [vmem:[%s14] sm:$0x1]
          %v1822 = vsel %vm704, %v1814, 0.0
          %1823 = vadd.xlane.f32.xlu0 %v1822
          %v1824 = vpop.xlane.xlu0 %1823
          %v1825 = vmul.f32 %v1824, %v714
          %v1826 = vsub.f32 %v1814, %v1825
          %v1827 = vmul.f32 %v1826, %v1826
          %v1828 = vsel %vm704, %v1827, 0.0
          %1829 = vadd.xlane.f32.xlu0 %v1828
          %v1830 = vpop.xlane.xlu0 %1829
          %v1831 = vmul.f32 %v1830, %v714
          %v1832 = vadd.f32 %v1831, 1e-05
          %v1833 = vrsqrt.pop %v1832
          %v1834 = vmul.f32 %v1833, %v1832
          %v1835 = vmul.f32 %v1834, %v1833
          %v1836 = vmul.f32 0.5, %v1835
          %v1837 = vsub.f32 1.5, %v1836
          %v1838 = vmul.f32 %v1833, %v1837
          %vm1839 = vweird.f32 %v1832
          %vm1840 = vweird.f32 %v1833
          %vm1841 = vmor %vm1839, %vm1840
          %v1842 = vsel %vm1841, %v1833, %v1838
          %v1843 = vmul.f32 %v1826, %v1842
          %v1845 = vperm.slane %v1820, 0
          %v1847 = vmul.f32 %v1843, %v1845
          %v1849 = vperm.slane %v1821, 0
          %v1851 = vadd.f32 %v1847, %v1849
          %1852 = vst.msk [vmem:[%s610] sm:$0xff] %vm704, %v1851
        $region118: #{tpu_custom_call.1} parent=75 // pred_fallthru
          _
        %s1853 = sand.u32 %s403, 1
        %s1854 = scalar_lea.sflag [#allocation5], %s1853
        %s1855 = sand.u32 %s403, 1
        %s1856 = smul.addr %s1855, 8
        %s1857 = scalar_lea.vmem [#allocation4], %s1856
        // Predicated region
        $region119: #{tpu_custom_call.1} parent=75 // pred_check
          %p1858 = pneg %p413
        $region120: #{tpu_custom_call.1} parent=75 // pred_check_branch
          %1860 = sbr.rel (%p1858) target = $region122
        $region121: #{tpu_custom_call.1} parent=75 // pred_region
          %1862 = vsyncadd %s1854, 0
          %s1863 = smul.addr %s33, 8
          %s1864 = scalar_lea.hbm %s15, %s1863
          %s1866 = sshll.u32 %s1857, 4
          %s1867 = int_to_ptr.vmem [resolvable:$true] %s1866
          %s1868 = sshll.u32 %s1864, 4
          %s1869 = int_to_ptr.hbm [resolvable:$true] %s1868
          %1871 = dma.vmem_to_hbm [thread:$0]  %s1867, 128, %s1869, %s1854
        $region122: #{tpu_custom_call.1} parent=75 // pred_fallthru
          _
      $region76: #{tpu_custom_call.1} parent=5 // pred_fallthru
        _
      %p1872 = scmp.le.s32.totalorder 2, %s24
      // Predicated region
      $region123: #{tpu_custom_call.1} parent=5 // pred_check
        %p1873 = pneg %p1872
      $region124: #{tpu_custom_call.1} parent=5 // pred_check_branch
        %1875 = sbr.rel (%p1873) target = $region126
      $region125: #{tpu_custom_call.1} parent=5 // pred_region
        %s1876 = ssub.s32 %s24, 2
        // Predicated region
        $region127: #{tpu_custom_call.1} parent=125 // pred_check
          %p1877 = pneg %p419
        $region128: #{tpu_custom_call.1} parent=125 // pred_check_branch
          %1879 = sbr.rel (%p1877) target = $region130
        $region129: #{tpu_custom_call.1} parent=125 // pred_region
          %s1880 = sand.u32 %s404, 1
          %s1881 = scalar_lea.sflag [#allocation5], %s1880
          %s1882 = sand.u32 %s404, 1
          %s1883 = smul.addr %s1882, 8
          %s1884 = scalar_lea.vmem [#allocation4], %s1883
          %1886 = dma.done %s1881, 128
        $region130: #{tpu_custom_call.1} parent=125 // pred_fallthru
          _
      $region126: #{tpu_custom_call.1} parent=5 // pred_fallthru
        _
    $region6: #{tpu_custom_call.1} parent=1 // loop_footer
      %s28 = sadd.s32 1, %s24
    $region7: #{tpu_custom_call.1} parent=1 // loop_footer_branch
      %23 = sbr.rel target = $region3
    $region8: #{tpu_custom_call.1} parent=1 // loop_exit
      _
    %1887 = vsyncpa [#allocation5], 1
    %s1888 = scalar_lea.sflag [#allocation5], 1
    %1889 = vsyncpa %s1888, 1
  %1890 = vsyncmov [#allocation3]
  %s1891 = vpop.sfrf %1890
  %p1892 = scmp.eq.s32.totalorder %s1891, 0
  %p1893 = pneg %p1892
  %1895 = shalt.err (%p1893)

</llo_original>
